<compile_context>
chip_gen: v7x
topology: tpu7x:2x2x1
jax: 0.10.0
libtpu: 0.0.40
codegen_flags: <defaults>
</compile_context>

<pallas_src>
import math
import functools

import jax
import jax.numpy as jnp
from jax import lax
from jax.experimental import pallas as pl
from jax.experimental.pallas import tpu as pltpu

LN_EPS = 1e-5


# --------------------------------------------------------------------------- #
# Hardware-dependent configuration
# --------------------------------------------------------------------------- #
def _detect_vmem_bytes():
    try:
        info = pltpu.get_tpu_info()
        for attr in ("vmem_capacity_bytes", "vmem_bytes", "vmem_size_bytes"):
            v = getattr(info, attr, None)
            if v:
                return int(v)
    except Exception:
        pass
    return 64 * 1024 * 1024          # conservative fallback (v7x physical VMEM)


_VMEM_PHYS = _detect_vmem_bytes()
_VMEM_LIMIT = min(int(_VMEM_PHYS * 3 // 4), 110 * 1024 * 1024)
_VMEM_BUDGET = int(_VMEM_LIMIT * 0.8)        # headroom for our own estimates
_LARGE_VMEM = _VMEM_PHYS >= 100 * 1024 * 1024   # v5e / v6e (128 MiB) vs v7x (64 MiB)

_TM_CAP = 512 if _LARGE_VMEM else 256        # row tile cap
_TN_CAP = 512 if _LARGE_VMEM else 256        # output-column tile cap
_TK_CAP = 512                                # reduction tile cap
_TF_CAP = 1024 if _LARGE_VMEM else 512       # dim_feedforward tile cap


# --------------------------------------------------------------------------- #
# helpers
# --------------------------------------------------------------------------- #
def _round_up(x, m):
    return ((x + m - 1) // m) * m


def _pick_tile(dim, max_tile):
    """Full-dim block when it fits (always legal), otherwise an aligned tile + padded extent."""
    if dim <= max_tile:
        return dim, dim
    return max_tile, _round_up(dim, max_tile)


def _pad2(a, rows, cols):
    r, c = a.shape
    if r == rows and c == cols:
        return a
    return jnp.pad(a, ((0, rows - r), (0, cols - c)))


# --- probe whether pipeline_mode=pl.Buffered(1) is available on this stack ---- #
def _probe_buffered1():
    try:
        def _k(x_ref, o_ref):
            o_ref[...] = x_ref[...] * 2.0

        spec = pl.BlockSpec((8, 128), lambda i: (0, 0), pipeline_mode=pl.Buffered(1))
        fn = pl.pallas_call(
            _k,
            out_shape=jax.ShapeDtypeStruct((16, 128), jnp.float32),
            grid=(2,),
            in_specs=[spec],
            out_specs=pl.BlockSpec((8, 128), lambda i: (i, 0)),
        )
        jax.block_until_ready(fn(jnp.ones((8, 128), jnp.float32)))
        return True
    except Exception:
        return False


_BUF1_OK = _probe_buffered1()


def _single_buffered(shape, index_map):
    """BlockSpec whose block index never changes across the grid -> single-buffer it."""
    if _BUF1_OK:
        return pl.BlockSpec(shape, index_map, pipeline_mode=pl.Buffered(1))
    return pl.BlockSpec(shape, index_map)


# --------------------------------------------------------------------------- #
# Pallas kernels
# --------------------------------------------------------------------------- #
def _linear_kernel(x_ref, w_ref, b_ref, o_ref, acc_ref, *, activation):
    """Tiled matmul + bias (+ optional ReLU). Operands are bf16, accumulation f32."""
    @pl.when(pl.program_id(2) == 0)
    def _init():
        acc_ref[...] = jnp.zeros_like(acc_ref)

    acc_ref[...] += jnp.dot(x_ref[...], w_ref[...], preferred_element_type=jnp.float32)

    @pl.when(pl.program_id(2) == pl.num_programs(2) - 1)
    def _finalize():
        out = acc_ref[...] + b_ref[...]
        if activation == "relu":
            out = jnp.maximum(out, 0.0)
        o_ref[...] = out.astype(o_ref.dtype)


def linear(x, w_p, b_p, n_out, activation=None):
    """x: (M, K) any float; w_p: (Kp, Np) bf16 pre-padded; b_p: (1, Np) f32 -> (M, n_out) f32."""
    M, K = x.shape
    Kp, Np = w_p.shape
    tm, Mp = _pick_tile(M, _TM_CAP)
    tk = Kp if Kp <= _TK_CAP else _TK_CAP
    tn = Np if Np <= _TN_CAP else _TN_CAP
    # bf16 activations into the MXU path: halves the x DMA bytes (x tiles are
    # re-streamed Np/tn times on the vocab projection).
    xp = _pad2(x.astype(jnp.bfloat16), Mp, Kp)
    out = pl.pallas_call(
        functools.partial(_linear_kernel, activation=activation),
        out_shape=jax.ShapeDtypeStruct((Mp, Np), jnp.float32),
        grid=(Mp // tm, Np // tn, Kp // tk),
        in_specs=[pl.BlockSpec((tm, tk), lambda i, j, k: (i, k)),
                  pl.BlockSpec((tk, tn), lambda i, j, k: (k, j)),
                  pl.BlockSpec((1, tn), lambda i, j, k: (0, j))],
        out_specs=pl.BlockSpec((tm, tn), lambda i, j, k: (i, j)),
        scratch_shapes=[pltpu.VMEM((tm, tn), jnp.float32)],
        compiler_params=pltpu.CompilerParams(
            dimension_semantics=("parallel", "parallel", "arbitrary"),
            vmem_limit_bytes=_VMEM_LIMIT),
    )(xp, w_p, b_p)
    return out[:M, :n_out]


def _mha_heads_to_scratch(qkv16, attn_sc, nhead, scale):
    """Per-head softmax attention; each head's output written into its lane slice of attn_sc."""
    D = qkv16.shape[-1] // 3
    Dh = D // nhead
    for h in range(nhead):                               # static unroll, static lane slices
        q = qkv16[:, h * Dh:(h + 1) * Dh]
        k = qkv16[:, D + h * Dh:D + (h + 1) * Dh]
        v = qkv16[:, 2 * D + h * Dh:2 * D + (h + 1) * Dh]
        s = lax.dot_general(q, k, (((1,), (1,)), ((), ())),
                            preferred_element_type=jnp.float32) * scale       # (S, S)
        s = s - jnp.max(s, axis=-1, keepdims=True)
        p = jnp.exp(s)
        p = p * pl.reciprocal(jnp.sum(p, axis=-1, keepdims=True), approx=True)
        attn_sc[:, h * Dh:(h + 1) * Dh] = jnp.dot(
            p.astype(jnp.bfloat16), v, preferred_element_type=jnp.float32)    # (S, Dh)


def _attn_fused_kernel(x_ref, win_ref, bin_ref, wout_ref, bout_ref,
                       g_ref, beta_ref, o_ref, attn_sc, *, nhead, scale, eps):
    """Fused: QKV in-proj + multi-head attention + out-proj + residual + LayerNorm (one batch elem)."""
    # TODO(synk): add query/KV tiling (flash-style online softmax) for very long sequences.
    x = x_ref[0]                                         # (S, D) f32
    qkv = jnp.dot(x.astype(jnp.bfloat16), win_ref[...],
                  preferred_element_type=jnp.float32) + bin_ref[...]          # (S, 3D)
    _mha_heads_to_scratch(qkv.astype(jnp.bfloat16), attn_sc, nhead, scale)
    proj = jnp.dot(attn_sc[...].astype(jnp.bfloat16), wout_ref[...],
                   preferred_element_type=jnp.float32) + bout_ref[...]
    y = x + proj                                         # residual (f32)
    mean = jnp.mean(y, axis=-1, keepdims=True)
    c = y - mean
    var = jnp.mean(c * c, axis=-1, keepdims=True)        # biased variance (torch LN)
    o_ref[0] = (c * lax.rsqrt(var + eps) * g_ref[...] + beta_ref[...]).astype(o_ref.dtype)


def attention_block_fused(x, win, bin_, wout, bout, gamma, beta, nhead):
    """x: (B, S, D) -> (B, S, D). Grid over batch; weights resident & single-buffered."""
    B, S, D = x.shape
    scale = 1.0 / math.sqrt(D // nhead)

    def csp(shape):
        return _single_buffered(shape, lambda b: (0, 0))

    return pl.pallas_call(
        functools.partial(_attn_fused_kernel, nhead=nhead, scale=scale, eps=LN_EPS),
        out_shape=jax.ShapeDtypeStruct((B, S, D), jnp.float32),
        grid=(B,),
        in_specs=[pl.BlockSpec((1, S, D), lambda b: (b, 0, 0)),
                  csp((D, 3 * D)), csp((1, 3 * D)),
                  csp((D, D)), csp((1, D)),
                  csp((1, D)), csp((1, D))],
        out_specs=pl.BlockSpec((1, S, D), lambda b: (b, 0, 0)),
        scratch_shapes=[pltpu.VMEM((S, D), jnp.float32)],
        compiler_params=pltpu.CompilerParams(
            dimension_semantics=("parallel",),
            vmem_limit_bytes=_VMEM_LIMIT),
    )(x, win, bin_, wout, bout, gamma, beta)


def _attn_core_kernel(qkv_ref, o_ref, attn_sc, *, nhead, scale):
    """Attention core for the decomposed path: softmax attention only, no weights in VMEM."""
    qkv = qkv_ref[0]                                     # (S, 3D) f32
    _mha_heads_to_scratch(qkv.astype(jnp.bfloat16), attn_sc, nhead, scale)
    o_ref[0] = attn_sc[...].astype(o_ref.dtype)


def attention_core(qkv, nhead):
    """qkv: (B, S, 3D) f32 -> (B, S, D) bf16 (fed straight into the out-proj matmul)."""
    B, S, D3 = qkv.shape
    D = D3 // 3
    scale = 1.0 / math.sqrt(D // nhead)
    return pl.pallas_call(
        functools.partial(_attn_core_kernel, nhead=nhead, scale=scale),
        out_shape=jax.ShapeDtypeStruct((B, S, D), jnp.bfloat16),
        grid=(B,),
        in_specs=[pl.BlockSpec((1, S, D3), lambda b: (b, 0, 0))],
        out_specs=pl.BlockSpec((1, S, D), lambda b: (b, 0, 0)),
        scratch_shapes=[pltpu.VMEM((S, D), jnp.float32)],
        compiler_params=pltpu.CompilerParams(
            dimension_semantics=("parallel",),
            vmem_limit_bytes=_VMEM_LIMIT),
    )(qkv)


def _add_ln_kernel(x_ref, y_ref, g_ref, b_ref, o_ref, *, eps):
    y = x_ref[...] + y_ref[...]
    mean = jnp.mean(y, axis=-1, keepdims=True)
    c = y - mean
    var = jnp.mean(c * c, axis=-1, keepdims=True)
    o_ref[...] = (c * lax.rsqrt(var + eps) * g_ref[...] + b_ref[...]).astype(o_ref.dtype)


def add_layernorm(x, y, gamma, beta):
    """LayerNorm(x + y) over rows. x, y: (M, D) f32."""
    M, D = x.shape
    tm, Mp = _pick_tile(M, _TM_CAP)
    xp = _pad2(x, Mp, D)
    yp = _pad2(y, Mp, D)
    out = pl.pallas_call(
        functools.partial(_add_ln_kernel, eps=LN_EPS),
        out_shape=jax.ShapeDtypeStruct((Mp, D), jnp.float32),
        grid=(Mp // tm,),
        in_specs=[pl.BlockSpec((tm, D), lambda i: (i, 0)),
                  pl.BlockSpec((tm, D), lambda i: (i, 0)),
                  _single_buffered((1, D), lambda i: (0, 0)),
                  _single_buffered((1, D), lambda i: (0, 0))],
        out_specs=pl.BlockSpec((tm, D), lambda i: (i, 0)),
        compiler_params=pltpu.CompilerParams(
            dimension_semantics=("parallel",),
            vmem_limit_bytes=_VMEM_LIMIT),
    )(xp, yp, gamma, beta)
    return out[:M]


def _ffn_block_kernel(x_ref, w1_ref, b1_ref, w2_ref, b2_ref, g_ref, beta_ref,
                      o_ref, acc_ref, *, eps):
    """Fused FFN: relu(x@W1+b1)@W2 accumulated over dff tiles, then +b2, residual, LayerNorm."""
    @pl.when(pl.program_id(1) == 0)
    def _init():
        acc_ref[...] = jnp.zeros_like(acc_ref)

    h = jnp.dot(x_ref[...].astype(jnp.bfloat16), w1_ref[...],
                preferred_element_type=jnp.float32) + b1_ref[...]
    h = jnp.maximum(h, 0.0)
    acc_ref[...] += jnp.dot(h.astype(jnp.bfloat16), w2_ref[...],
                            preferred_element_type=jnp.float32)

    @pl.when(pl.program_id(1) == pl.num_programs(1) - 1)
    def _finalize():
        y = x_ref[...] + acc_ref[...] + b2_ref[...]        # residual (f32)
        mean = jnp.mean(y, axis=-1, keepdims=True)
        c = y - mean
        var = jnp.mean(c * c, axis=-1, keepdims=True)
        o_ref[...] = (c * lax.rsqrt(var + eps) * g_ref[...] + beta_ref[...]).astype(o_ref.dtype)


def ffn_block(x, w1_p, b1_p, w2_p, b2, gamma, beta):
    """x: (M, D) f32 -> (M, D) f32. Weights are pre-padded; dff padding is mathematically inert."""
    M, D = x.shape
    Fp = w1_p.shape[1]
    tf = Fp if Fp <= _TF_CAP else _TF_CAP
    # Shrink the row tile until the block set fits the VMEM budget (matters on v7x / big D).
    tm_cap = _TM_CAP
    while tm_cap > 128:
        est = (4 * tm_cap * D * 5                       # x(x2) + out(x2) + acc (f32)
               + 2 * (2 * D * tf + 2 * tf * D + 4 * tf)  # w1/w2/b1 double-buffered
               + 4 * tm_cap * tf)                        # (tm, tf) intermediate
        if est <= _VMEM_BUDGET:
            break
        tm_cap //= 2
    tm, Mp = _pick_tile(M, tm_cap)
    xp = _pad2(x, Mp, D)
    out = pl.pallas_call(
        functools.partial(_ffn_block_kernel, eps=LN_EPS),
        out_shape=jax.ShapeDtypeStruct((Mp, D), jnp.float32),
        grid=(Mp // tm, Fp // tf),
        in_specs=[pl.BlockSpec((tm, D), lambda i, f: (i, 0)),
                  pl.BlockSpec((D, tf), lambda i, f: (0, f)),
                  pl.BlockSpec((1, tf), lambda i, f: (0, f)),
                  pl.BlockSpec((tf, D), lambda i, f: (f, 0)),
                  _single_buffered((1, D), lambda i, f: (0, 0)),
                  _single_buffered((1, D), lambda i, f: (0, 0)),
                  _single_buffered((1, D), lambda i, f: (0, 0))],
        out_specs=pl.BlockSpec((tm, D), lambda i, f: (i, 0)),
        scratch_shapes=[pltpu.VMEM((tm, D), jnp.float32)],
        compiler_params=pltpu.CompilerParams(
            dimension_semantics=("parallel", "arbitrary"),
            vmem_limit_bytes=_VMEM_LIMIT),
    )(xp, w1_p, b1_p, w2_p, b2, gamma, beta)
    return out[:M]


# --------------------------------------------------------------------------- #
# Parameters / glue
# --------------------------------------------------------------------------- #
def positional_encoding(max_len, d_model):
    position = jnp.arange(max_len, dtype=jnp.float32)[:, None]
    div_term = jnp.exp(jnp.arange(0, d_model, 2, dtype=jnp.float32)
                       * (-math.log(10000.0) / d_model))
    pe = jnp.zeros((max_len, d_model), jnp.float32)
    pe = pe.at[:, 0::2].set(jnp.sin(position * div_term))
    pe = pe.at[:, 1::2].set(jnp.cos(position * div_term))
    return pe  # (max_len, d_model)


def init_params(key, vocab, d_model, nhead, num_layers, dff):
    """Torch-layout (out_features, in_features) f32 parameters."""
    def normal(k, shape, scale=0.02):
        return (scale * jax.random.normal(k, shape)).astype(jnp.float32)

    ks = iter(jax.random.split(key, 3 + 8 * num_layers))
    params = {
        "embedding": normal(next(ks), (vocab, d_model), 1.0),
        "fc_out_w": normal(next(ks), (vocab, d_model)),
        "fc_out_b": normal(next(ks), (vocab,)),
        "layers": [],
    }
    for _ in range(num_layers):
        params["layers"].append({
            "in_proj_w": normal(next(ks), (3 * d_model, d_model)),
            "in_proj_b": normal(next(ks), (3 * d_model,)),
            "out_proj_w": normal(next(ks), (d_model, d_model)),
            "out_proj_b": normal(next(ks), (d_model,)),
            "w1": normal(next(ks), (dff, d_model)),
            "b1": normal(next(ks), (dff,)),
            "w2": normal(next(ks), (d_model, dff)),
            "b2": normal(next(ks), (d_model,)),
            "ln1_g": jnp.ones((d_model,), jnp.float32),
            "ln1_b": jnp.zeros((d_model,), jnp.float32),
            "ln2_g": jnp.ones((d_model,), jnp.float32),
            "ln2_b": jnp.zeros((d_model,), jnp.float32),
        })
    return params


def _row(v):
    return jnp.asarray(v, jnp.float32).reshape(1, -1)


def _prep_linear_weight(w, b):
    """Torch (out, in) weight + (out,) bias -> padded (Kp, Np) bf16 weight, (1, Np) f32 bias."""
    w_t = jnp.asarray(w, jnp.float32).T
    K, N = w_t.shape
    _, Kp = _pick_tile(K, _TK_CAP)
    _, Np = _pick_tile(N, _TN_CAP)
    return _pad2(w_t, Kp, Np).astype(jnp.bfloat16), _pad2(_row(b), 1, Np)


def _prep_ffn_weights(w1, b1, w2, b2):
    F, D = w1.shape
    _, Fp = _pick_tile(F, _TF_CAP)
    w1p = _pad2(jnp.asarray(w1, jnp.float32).T, D, Fp).astype(jnp.bfloat16)   # (D, Fp)
    b1p = _pad2(_row(b1), 1, Fp)
    w2p = _pad2(jnp.asarray(w2, jnp.float32).T, Fp, D).astype(jnp.bfloat16)   # (Fp, D)
    return w1p, b1p, w2p, _row(b2)


def _fused_attn_fits(d_model, max_seq):
    """Rough VMEM footprint check for the fully fused per-batch attention kernel."""
    D, S = d_model, max_seq
    weights = 2 * (3 * D * D + D * D) * (1 if _BUF1_OK else 2)   # bf16 in/out proj
    io_blocks = 2 * 2 * 4 * S * D                                 # x & out, double-buffered f32
    qkv_tmp = (4 + 2) * S * 3 * D                                 # qkv f32 + bf16 copy
    scores = 3 * 4 * S * S                                        # one head's scores/exp/probs
    scratch = 2 * 4 * S * D                                       # attn scratch + proj/y temps
    return weights + io_blocks + qkv_tmp + scores + scratch <= _VMEM_BUDGET


def prepare_params(params, max_len, force_split_attention=False):
    """One-time kernel-layout conversion OUTSIDE jit: transpose, pad and bf16-cast weights."""
    emb = jnp.asarray(params["embedding"], jnp.float32)
    d_model = emb.shape[1]
    fused = (not force_split_attention) and _fused_attn_fits(d_model, max_len)

    prep = {"embedding": emb, "pe": positional_encoding(max_len, d_model), "layers": []}
    prep["fc_w"], prep["fc_b"] = _prep_linear_weight(params["fc_out_w"], params["fc_out_b"])

    for lyr in params["layers"]:
        entry = {
            "ln1_g": _row(lyr["ln1_g"]), "ln1_b": _row(lyr["ln1_b"]),
            "ln2_g": _row(lyr["ln2_g"]), "ln2_b": _row(lyr["ln2_b"]),
        }
        w1p, b1p, w2p, b2p = _prep_ffn_weights(lyr["w1"], lyr["b1"], lyr["w2"], lyr["b2"])
        entry.update({"w1": w1p, "b1": b1p, "w2": w2p, "b2": b2p})
        if fused:
            entry["attn_fused"] = {
                "win": jnp.asarray(lyr["in_proj_w"], jnp.float32).T.astype(jnp.bfloat16),
                "bin": _row(lyr["in_proj_b"]),
                "wout": jnp.asarray(lyr["out_proj_w"], jnp.float32).T.astype(jnp.bfloat16),
                "bout": _row(lyr["out_proj_b"]),
            }
        else:
            win, binp = _prep_linear_weight(lyr["in_proj_w"], lyr["in_proj_b"])
            wout, boutp = _prep_linear_weight(lyr["out_proj_w"], lyr["out_proj_b"])
            entry["attn_split"] = {"win": win, "bin": binp, "wout": wout, "bout": boutp}
        prep["layers"].append(entry)
    return prep


def simple_llama_forward(prep, src, nhead):
    """src: (S, B) int32 token ids -> (S, B, vocab) logits."""
    S, B = src.shape
    V, D = prep["embedding"].shape

    # Embedding gather + positional encoding: data-dependent gather, kept as XLA glue.
    # NOTE: scale is sqrt(src.size(-1)) == sqrt(B), faithfully reproducing the PyTorch code.
    x = prep["embedding"][src.T] * math.sqrt(B)          # (B, S, D)
    x = x + prep["pe"][:S][None, :, :]

    for lyr in prep["layers"]:
        if "attn_fused" in lyr:
            a = lyr["attn_fused"]
            x = attention_block_fused(x, a["win"], a["bin"], a["wout"], a["bout"],
                                      lyr["ln1_g"], lyr["ln1_b"], nhead)
        else:
            # Decomposed path for large d_model: tiled projections + attention core + add+LN.
            a = lyr["attn_split"]
            x2 = x.reshape(B * S, D)
            qkv = linear(x2, a["win"], a["bin"], 3 * D).reshape(B, S, 3 * D)
            attn = attention_core(qkv, nhead).reshape(B * S, D)
            proj = linear(attn, a["wout"], a["bout"], D)
            x = add_layernorm(x2, proj, lyr["ln1_g"], lyr["ln1_b"]).reshape(B, S, D)
        x = ffn_block(x.reshape(B * S, D), lyr["w1"], lyr["b1"],
                      lyr["w2"], lyr["b2"], lyr["ln2_g"], lyr["ln2_b"]).reshape(B, S, D)

    # Transpose the cheap D-wide activations (not the V-wide logits), then project.
    xt = x.transpose(1, 0, 2).reshape(S * B, D)          # (S*B, D)
    logits = linear(xt, prep["fc_w"], prep["fc_b"], V)   # (S*B, V)
    return logits.reshape(S, B, V)


# --------------------------------------------------------------------------- #
# Pure-JAX f32 reference (same math, no Pallas) for verification
# --------------------------------------------------------------------------- #
def _ln_ref(h, g, b):
    m = jnp.mean(h, axis=-1, keepdims=True)
    c = h - m
    v = jnp.mean(c * c, axis=-1, keepdims=True)
    return c * lax.rsqrt(v + LN_EPS) * g + b


def reference_forward(params, src, nhead, pe):
    S, B = src.shape
    D = params["embedding"].shape[1]
    H = nhead
    Dh = D // H
    x = params["embedding"][src] * math.sqrt(B)
    x = x + pe[:S][:, None, :]
    for layer in params["layers"]:
        qkv = x @ layer["in_proj_w"].T + layer["in_proj_b"]
        q, k, v = jnp.split(qkv, 3, axis=-1)

        def heads(t):
            return t.reshape(S, B, H, Dh).transpose(1, 2, 0, 3)

        qh, kh, vh = heads(q), heads(k), heads(v)
        s = jnp.einsum("bhqd,bhkd->bhqk", qh, kh) / math.sqrt(Dh)
        p = jax.nn.softmax(s, axis=-1)
        o = jnp.einsum("bhqk,bhkd->bhqd", p, vh)
        o = o.transpose(2, 0, 1, 3).reshape(S, B, D)
        o = o @ layer["out_proj_w"].T + layer["out_proj_b"]
        x = _ln_ref(x + o, layer["ln1_g"], layer["ln1_b"])
        h = jnp.maximum(x @ layer["w1"].T + layer["b1"], 0.0)
        h = h @ layer["w2"].T + layer["b2"]
        x = _ln_ref(x + h, layer["ln2_g"], layer["ln2_b"])
    return x @ params["fc_out_w"].T + params["fc_out_b"]


# --------------------------------------------------------------------------- #
if __name__ == "__main__":
    vocab_size = 50
    d_model = 32
    nhead = 4
    num_layers = 2
    dim_feedforward = 64
    max_len = 64
    seq_len, batch = 8, 2

    key = jax.random.PRNGKey(0)
    pkey, tkey = jax.random.split(key)
    params = init_params(pkey, vocab_size, d_model, nhead, num_layers, dim_feedforward)
    src = jax.random.randint(tkey, (seq_len, batch), 0, vocab_size, dtype=jnp.int32)

    fwd = jax.jit(simple_llama_forward, static_argnames=("nhead",))
    ref = reference_forward(params, src, nhead, positional_encoding(max_len, d_model))

    # Fused-attention path (chosen automatically at these shapes).
    prep_fused = prepare_params(params, max_len)
    out = jax.block_until_ready(fwd(prep_fused, src, nhead=nhead))
    assert out.shape == (seq_len, batch, vocab_size), out.shape
    err_fused = float(jnp.max(jnp.abs(out - ref)))
    assert jnp.allclose(out, ref, rtol=2e-2, atol=2e-2), f"fused max_err={err_fused}"

    # Decomposed (large-d_model fallback) path, forced, to validate it as well.
    prep_split = prepare_params(params, max_len, force_split_attention=True)
    out_split = jax.block_until_ready(fwd(prep_split, src, nhead=nhead))
    assert out_split.shape == (seq_len, batch, vocab_size), out_split.shape
    err_split = float(jnp.max(jnp.abs(out_split - ref)))
    assert jnp.allclose(out_split, ref, rtol=2e-2, atol=2e-2), f"split max_err={err_split}"

    print("KERNEL_OK")
</pallas_src>

<mosaic_0001>
module attributes {stable_mosaic.version = 11 : i64} {
  func.func @_k(%arg0: i32, %arg1: memref<8x128xf32, #tpu.memory_space<vmem>>, %arg2: memref<8x128xf32, #tpu.memory_space<vmem>>) attributes {dimension_semantics = [#tpu.dimension_semantics<arbitrary>], iteration_bounds = array<i64: 2>, scalar_prefetch = 0 : i64, scratch_operands = 0 : i64, tpu.core_type = #tpu.core_type<tc>, window_params = [{pipeline_mode = #tpu.pipeline_mode<synchronous>, transform_indices = @transform_0, window_bounds = array<i64: 8, 128>}, {transform_indices = @transform_1, window_bounds = array<i64: 8, 128>}]} {
    %c0 = arith.constant 0 : index
    %c0_0 = arith.constant 0 : index
    %0 = vector.load %arg1[%c0, %c0_0] : memref<8x128xf32, #tpu.memory_space<vmem>>, vector<8x128xf32>
    %cst = arith.constant 2.000000e+00 : f32
    %1 = vector.broadcast %cst : f32 to vector<8x128xf32>
    %2 = arith.mulf %0, %1 : vector<8x128xf32>
    %c0_1 = arith.constant 0 : index
    %c0_2 = arith.constant 0 : index
    %3 = vector.load %arg2[%c0_1, %c0_2] : memref<8x128xf32, #tpu.memory_space<vmem>>, vector<8x128xf32>
    tpu.vector_store %arg2[%c0_1, %c0_2], %2 {strides = array<i32>} : memref<8x128xf32, #tpu.memory_space<vmem>>, vector<8x128xf32>,
    return
  }
  func.func @transform_0(%arg0: i32) -> (i32, i32) {
    %c0_i32 = arith.constant 0 : i32
    %c0_i32_0 = arith.constant 0 : i32
    %c0_i32_1 = arith.constant 0 : i32
    return %c0_i32, %c0_i32_0 : i32, i32
  }
  func.func @transform_1(%arg0: i32) -> (i32, i32) {
    %c0_i32 = arith.constant 0 : i32
    %c0_i32_0 = arith.constant 0 : i32
    return %arg0, %c0_i32 : i32, i32
  }
}

module attributes {stable_mosaic.version = 11 : i64} {
  func.func @_linear_kernel(%arg0: i32, %arg1: i32, %arg2: i32, %arg3: memref<16x32xbf16, #tpu.memory_space<vmem>>, %arg4: memref<32x50xbf16, #tpu.memory_space<vmem>>, %arg5: memref<1x50xf32, #tpu.memory_space<vmem>>, %arg6: memref<16x50xf32, #tpu.memory_space<vmem>>, %arg7: memref<16x50xf32, #tpu.memory_space<vmem>>) attributes {dimension_semantics = [#tpu.dimension_semantics<parallel>, #tpu.dimension_semantics<parallel>, #tpu.dimension_semantics<arbitrary>], iteration_bounds = array<i64: 1, 1, 1>, scalar_prefetch = 0 : i64, scratch_operands = 1 : i64, tpu.core_type = #tpu.core_type<tc>, window_params = [{transform_indices = @transform_0, window_bounds = array<i64: 16, 32>}, {transform_indices = @transform_1, window_bounds = array<i64: 32, 50>}, {transform_indices = @transform_2, window_bounds = array<i64: 1, 50>}, {transform_indices = @transform_3, window_bounds = array<i64: 16, 50>}]} {
    %c0_i32 = arith.constant 0 : i32
    %0 = arith.cmpi eq, %arg2, %c0_i32 : i32
    %1 = arith.extui %0 : i1 to i32
    %c0_i32_0 = arith.constant 0 : i32
    %2 = arith.cmpi ne, %1, %c0_i32_0 : i32
    scf.if %2 {
      %cst_10 = arith.constant 0.000000e+00 : f32
      %12 = vector.broadcast %cst_10 : f32 to vector<16x50xf32>
      %c0_11 = arith.constant 0 : index
      %c0_12 = arith.constant 0 : index
      %13 = vector.load %arg7[%c0_11, %c0_12] : memref<16x50xf32, #tpu.memory_space<vmem>>, vector<16x50xf32>
      tpu.vector_store %arg7[%c0_11, %c0_12], %12 {strides = array<i32>} : memref<16x50xf32, #tpu.memory_space<vmem>>, vector<16x50xf32>,
    } else {
    }
    %c0 = arith.constant 0 : index
    %c0_1 = arith.constant 0 : index
    %3 = vector.load %arg7[%c0, %c0_1] : memref<16x50xf32, #tpu.memory_space<vmem>>, vector<16x50xf32>
    %c0_2 = arith.constant 0 : index
    %c0_3 = arith.constant 0 : index
    %4 = vector.load %arg3[%c0_2, %c0_3] : memref<16x32xbf16, #tpu.memory_space<vmem>>, vector<16x32xbf16>
    %c0_4 = arith.constant 0 : index
    %c0_5 = arith.constant 0 : index
    %5 = vector.load %arg4[%c0_4, %c0_5] : memref<32x50xbf16, #tpu.memory_space<vmem>>, vector<32x50xbf16>
    %cst = arith.constant dense<0.000000e+00> : vector<16x50xf32>
    %6 = tpu.matmul %4, %5, %cst {dimension_numbers = #tpu.dot_dimension_numbers<[1], [0], [0], [1], [0, 0, 1, 1], [], []>} : vector<16x32xbf16>, vector<32x50xbf16>, vector<16x50xf32> -> vector<16x50xf32>
    %7 = arith.addf %3, %6 : vector<16x50xf32>
    %c0_6 = arith.constant 0 : index
    %c0_7 = arith.constant 0 : index
    %8 = vector.load %arg7[%c0_6, %c0_7] : memref<16x50xf32, #tpu.memory_space<vmem>>, vector<16x50xf32>
    tpu.vector_store %arg7[%c0_6, %c0_7], %7 {strides = array<i32>} : memref<16x50xf32, #tpu.memory_space<vmem>>, vector<16x50xf32>,
    %c0_i32_8 = arith.constant 0 : i32
    %9 = arith.cmpi eq, %arg2, %c0_i32_8 : i32
    %10 = arith.extui %9 : i1 to i32
    %c0_i32_9 = arith.constant 0 : i32
    %11 = arith.cmpi ne, %10, %c0_i32_9 : i32
    scf.if %11 {
      %c0_10 = arith.constant 0 : index
      %c0_11 = arith.constant 0 : index
      %12 = vector.load %arg7[%c0_10, %c0_11] : memref<16x50xf32, #tpu.memory_space<vmem>>, vector<16x50xf32>
      %c0_12 = arith.constant 0 : index
      %c0_13 = arith.constant 0 : index
      %13 = vector.load %arg5[%c0_12, %c0_13] : memref<1x50xf32, #tpu.memory_space<vmem>>, vector<1x50xf32>
      %14 = vector.broadcast %13 : vector<1x50xf32> to vector<16x50xf32>
      %15 = arith.addf %12, %14 : vector<16x50xf32>
      %c0_14 = arith.constant 0 : index
      %c0_15 = arith.constant 0 : index
      %16 = vector.load %arg6[%c0_14, %c0_15] : memref<16x50xf32, #tpu.memory_space<vmem>>, vector<16x50xf32>
      tpu.vector_store %arg6[%c0_14, %c0_15], %15 {strides = array<i32>} : memref<16x50xf32, #tpu.memory_space<vmem>>, vector<16x50xf32>,
    } else {
    }
    return
  }
  func.func @transform_0(%arg0: i32, %arg1: i32, %arg2: i32) -> (i32, i32) {
    %c0_i32 = arith.constant 0 : i32
    return %arg0, %arg2 : i32, i32
  }
  func.func @transform_1(%arg0: i32, %arg1: i32, %arg2: i32) -> (i32, i32) {
    %c0_i32 = arith.constant 0 : i32
    return %arg2, %arg1 : i32, i32
  }
  func.func @transform_2(%arg0: i32, %arg1: i32, %arg2: i32) -> (i32, i32) {
    %c0_i32 = arith.constant 0 : i32
    %c0_i32_0 = arith.constant 0 : i32
    return %c0_i32, %arg1 : i32, i32
  }
  func.func @transform_3(%arg0: i32, %arg1: i32, %arg2: i32) -> (i32, i32) {
    %c0_i32 = arith.constant 0 : i32
    return %arg0, %arg1 : i32, i32
  }
}

module attributes {stable_mosaic.version = 11 : i64} {
  func.func @_attn_fused_kernel(%arg0: i32, %arg1: memref<1x8x32xf32, #tpu.memory_space<vmem>>, %arg2: memref<32x96xbf16, #tpu.memory_space<vmem>>, %arg3: memref<1x96xf32, #tpu.memory_space<vmem>>, %arg4: memref<32x32xbf16, #tpu.memory_space<vmem>>, %arg5: memref<1x32xf32, #tpu.memory_space<vmem>>, %arg6: memref<1x32xf32, #tpu.memory_space<vmem>>, %arg7: memref<1x32xf32, #tpu.memory_space<vmem>>, %arg8: memref<1x8x32xf32, #tpu.memory_space<vmem>>, %arg9: memref<8x32xf32, #tpu.memory_space<vmem>>) attributes {dimension_semantics = [#tpu.dimension_semantics<parallel>], iteration_bounds = array<i64: 2>, scalar_prefetch = 0 : i64, scratch_operands = 1 : i64, tpu.core_type = #tpu.core_type<tc>, window_params = [{transform_indices = @transform_0, window_bounds = array<i64: 1, 8, 32>}, {pipeline_mode = #tpu.pipeline_mode<synchronous>, transform_indices = @transform_1, window_bounds = array<i64: 32, 96>}, {pipeline_mode = #tpu.pipeline_mode<synchronous>, transform_indices = @transform_2, window_bounds = array<i64: 1, 96>}, {pipeline_mode = #tpu.pipeline_mode<synchronous>, transform_indices = @transform_3, window_bounds = array<i64: 32, 32>}, {pipeline_mode = #tpu.pipeline_mode<synchronous>, transform_indices = @transform_4, window_bounds = array<i64: 1, 32>}, {pipeline_mode = #tpu.pipeline_mode<synchronous>, transform_indices = @transform_5, window_bounds = array<i64: 1, 32>}, {pipeline_mode = #tpu.pipeline_mode<synchronous>, transform_indices = @transform_6, window_bounds = array<i64: 1, 32>}, {transform_indices = @transform_7, window_bounds = array<i64: 1, 8, 32>}]} {
    %c0 = arith.constant 0 : index
    %c0_0 = arith.constant 0 : index
    %c0_1 = arith.constant 0 : index
    %0 = vector.load %arg1[%c0, %c0_0, %c0_1] : memref<1x8x32xf32, #tpu.memory_space<vmem>>, vector<1x8x32xf32>
    %1 = vector.shape_cast %0 : vector<1x8x32xf32> to vector<8x32xf32>
    %2 = arith.truncf %1 : vector<8x32xf32> to vector<8x32xbf16>
    %c0_2 = arith.constant 0 : index
    %c0_3 = arith.constant 0 : index
    %3 = vector.load %arg2[%c0_2, %c0_3] : memref<32x96xbf16, #tpu.memory_space<vmem>>, vector<32x96xbf16>
    %cst = arith.constant dense<0.000000e+00> : vector<8x96xf32>
    %4 = tpu.matmul %2, %3, %cst {dimension_numbers = #tpu.dot_dimension_numbers<[1], [0], [0], [1], [0, 0, 1, 1], [], []>} : vector<8x32xbf16>, vector<32x96xbf16>, vector<8x96xf32> -> vector<8x96xf32>
    %c0_4 = arith.constant 0 : index
    %c0_5 = arith.constant 0 : index
    %5 = vector.load %arg3[%c0_4, %c0_5] : memref<1x96xf32, #tpu.memory_space<vmem>>, vector<1x96xf32>
    %6 = vector.broadcast %5 : vector<1x96xf32> to vector<8x96xf32>
    %7 = arith.addf %4, %6 : vector<8x96xf32>
    %8 = arith.truncf %7 : vector<8x96xf32> to vector<8x96xbf16>
    %9 = vector.extract_strided_slice %8 {offsets = [0, 0], sizes = [8, 8], strides = [1, 1]} : vector<8x96xbf16> to vector<8x8xbf16>
    %10 = vector.extract_strided_slice %8 {offsets = [0, 32], sizes = [8, 8], strides = [1, 1]} : vector<8x96xbf16> to vector<8x8xbf16>
    %11 = vector.extract_strided_slice %8 {offsets = [0, 64], sizes = [8, 8], strides = [1, 1]} : vector<8x96xbf16> to vector<8x8xbf16>
    %cst_6 = arith.constant dense<0.000000e+00> : vector<8x8xf32>
    %12 = tpu.matmul %9, %10, %cst_6 {dimension_numbers = #tpu.dot_dimension_numbers<[1], [1], [0], [0], [0, 0, 1, 0], [], []>} : vector<8x8xbf16>, vector<8x8xbf16>, vector<8x8xf32> -> vector<8x8xf32>
    %cst_7 = arith.constant 0.353553385 : f32
    %13 = vector.broadcast %cst_7 : f32 to vector<8x8xf32>
    %14 = arith.mulf %12, %13 : vector<8x8xf32>
    %cst_8 = arith.constant dense<0xFF800000> : vector<8xf32>
    %15 = vector.multi_reduction <maximumf>, %14, %cst_8 [1] : vector<8x8xf32> to vector<8xf32>
    %16 = vector.shape_cast %15 : vector<8xf32> to vector<8x1xf32>
    %17 = vector.broadcast %16 : vector<8x1xf32> to vector<8x8xf32>
    %18 = arith.subf %14, %17 : vector<8x8xf32>
    %19 = math.exp %18 : vector<8x8xf32>
    %cst_9 = arith.constant dense<0.000000e+00> : vector<8xf32>
    %20 = vector.multi_reduction <add>, %19, %cst_9 [1] : vector<8x8xf32> to vector<8xf32>
    %21 = vector.shape_cast %20 : vector<8xf32> to vector<8x1xf32>
    %22 = tpu.reciprocal %21 {approx = true} : vector<8x1xf32> -> vector<8x1xf32>
    %23 = vector.broadcast %22 : vector<8x1xf32> to vector<8x8xf32>
    %24 = arith.mulf %19, %23 : vector<8x8xf32>
    %25 = arith.truncf %24 : vector<8x8xf32> to vector<8x8xbf16>
    %cst_10 = arith.constant dense<0.000000e+00> : vector<8x8xf32>
    %26 = tpu.matmul %25, %11, %cst_10 {dimension_numbers = #tpu.dot_dimension_numbers<[1], [0], [0], [1], [0, 0, 1, 1], [], []>} : vector<8x8xbf16>, vector<8x8xbf16>, vector<8x8xf32> -> vector<8x8xf32>
    %c0_11 = arith.constant 0 : index
    %c0_12 = arith.constant 0 : index
    %27 = vector.load %arg9[%c0_11, %c0_12] : memref<8x32xf32, #tpu.memory_space<vmem>>, vector<8x8xf32>
    tpu.vector_store %arg9[%c0_11, %c0_12], %26 {strides = array<i32>} : memref<8x32xf32, #tpu.memory_space<vmem>>, vector<8x8xf32>,
    %28 = vector.extract_strided_slice %8 {offsets = [0, 8], sizes = [8, 8], strides = [1, 1]} : vector<8x96xbf16> to vector<8x8xbf16>
    %29 = vector.extract_strided_slice %8 {offsets = [0, 40], sizes = [8, 8], strides = [1, 1]} : vector<8x96xbf16> to vector<8x8xbf16>
    %30 = vector.extract_strided_slice %8 {offsets = [0, 72], sizes = [8, 8], strides = [1, 1]} : vector<8x96xbf16> to vector<8x8xbf16>
    %cst_13 = arith.constant dense<0.000000e+00> : vector<8x8xf32>
    %31 = tpu.matmul %28, %29, %cst_13 {dimension_numbers = #tpu.dot_dimension_numbers<[1], [1], [0], [0], [0, 0, 1, 0], [], []>} : vector<8x8xbf16>, vector<8x8xbf16>, vector<8x8xf32> -> vector<8x8xf32>
    %cst_14 = arith.constant 0.353553385 : f32
    %32 = vector.broadcast %cst_14 : f32 to vector<8x8xf32>
    %33 = arith.mulf %31, %32 : vector<8x8xf32>
    %cst_15 = arith.constant dense<0xFF800000> : vector<8xf32>
    %34 = vector.multi_reduction <maximumf>, %33, %cst_15 [1] : vector<8x8xf32> to vector<8xf32>
    %35 = vector.shape_cast %34 : vector<8xf32> to vector<8x1xf32>
    %36 = vector.broadcast %35 : vector<8x1xf32> to vector<8x8xf32>
    %37 = arith.subf %33, %36 : vector<8x8xf32>
    %38 = math.exp %37 : vector<8x8xf32>
    %cst_16 = arith.constant dense<0.000000e+00> : vector<8xf32>
    %39 = vector.multi_reduction <add>, %38, %cst_16 [1] : vector<8x8xf32> to vector<8xf32>
    %40 = vector.shape_cast %39 : vector<8xf32> to vector<8x1xf32>
    %41 = tpu.reciprocal %40 {approx = true} : vector<8x1xf32> -> vector<8x1xf32>
    %42 = vector.broadcast %41 : vector<8x1xf32> to vector<8x8xf32>
    %43 = arith.mulf %38, %42 : vector<8x8xf32>
    %44 = arith.truncf %43 : vector<8x8xf32> to vector<8x8xbf16>
    %cst_17 = arith.constant dense<0.000000e+00> : vector<8x8xf32>
    %45 = tpu.matmul %44, %30, %cst_17 {dimension_numbers = #tpu.dot_dimension_numbers<[1], [0], [0], [1], [0, 0, 1, 1], [], []>} : vector<8x8xbf16>, vector<8x8xbf16>, vector<8x8xf32> -> vector<8x8xf32>
    %c0_18 = arith.constant 0 : index
    %c8 = arith.constant 8 : index
    %46 = vector.load %arg9[%c0_18, %c8] : memref<8x32xf32, #tpu.memory_space<vmem>>, vector<8x8xf32>
    tpu.vector_store %arg9[%c0_18, %c8], %45 {strides = array<i32>} : memref<8x32xf32, #tpu.memory_space<vmem>>, vector<8x8xf32>,
    %47 = vector.extract_strided_slice %8 {offsets = [0, 16], sizes = [8, 8], strides = [1, 1]} : vector<8x96xbf16> to vector<8x8xbf16>
    %48 = vector.extract_strided_slice %8 {offsets = [0, 48], sizes = [8, 8], strides = [1, 1]} : vector<8x96xbf16> to vector<8x8xbf16>
    %49 = vector.extract_strided_slice %8 {offsets = [0, 80], sizes = [8, 8], strides = [1, 1]} : vector<8x96xbf16> to vector<8x8xbf16>
    %cst_19 = arith.constant dense<0.000000e+00> : vector<8x8xf32>
    %50 = tpu.matmul %47, %48, %cst_19 {dimension_numbers = #tpu.dot_dimension_numbers<[1], [1], [0], [0], [0, 0, 1, 0], [], []>} : vector<8x8xbf16>, vector<8x8xbf16>, vector<8x8xf32> -> vector<8x8xf32>
    %cst_20 = arith.constant 0.353553385 : f32
    %51 = vector.broadcast %cst_20 : f32 to vector<8x8xf32>
    %52 = arith.mulf %50, %51 : vector<8x8xf32>
    %cst_21 = arith.constant dense<0xFF800000> : vector<8xf32>
    %53 = vector.multi_reduction <maximumf>, %52, %cst_21 [1] : vector<8x8xf32> to vector<8xf32>
    %54 = vector.shape_cast %53 : vector<8xf32> to vector<8x1xf32>
    %55 = vector.broadcast %54 : vector<8x1xf32> to vector<8x8xf32>
    %56 = arith.subf %52, %55 : vector<8x8xf32>
    %57 = math.exp %56 : vector<8x8xf32>
    %cst_22 = arith.constant dense<0.000000e+00> : vector<8xf32>
    %58 = vector.multi_reduction <add>, %57, %cst_22 [1] : vector<8x8xf32> to vector<8xf32>
    %59 = vector.shape_cast %58 : vector<8xf32> to vector<8x1xf32>
    %60 = tpu.reciprocal %59 {approx = true} : vector<8x1xf32> -> vector<8x1xf32>
    %61 = vector.broadcast %60 : vector<8x1xf32> to vector<8x8xf32>
    %62 = arith.mulf %57, %61 : vector<8x8xf32>
    %63 = arith.truncf %62 : vector<8x8xf32> to vector<8x8xbf16>
    %cst_23 = arith.constant dense<0.000000e+00> : vector<8x8xf32>
    %64 = tpu.matmul %63, %49, %cst_23 {dimension_numbers = #tpu.dot_dimension_numbers<[1], [0], [0], [1], [0, 0, 1, 1], [], []>} : vector<8x8xbf16>, vector<8x8xbf16>, vector<8x8xf32> -> vector<8x8xf32>
    %c0_24 = arith.constant 0 : index
    %c16 = arith.constant 16 : index
    %65 = vector.load %arg9[%c0_24, %c16] : memref<8x32xf32, #tpu.memory_space<vmem>>, vector<8x8xf32>
    tpu.vector_store %arg9[%c0_24, %c16], %64 {strides = array<i32>} : memref<8x32xf32, #tpu.memory_space<vmem>>, vector<8x8xf32>,
    %66 = vector.extract_strided_slice %8 {offsets = [0, 24], sizes = [8, 8], strides = [1, 1]} : vector<8x96xbf16> to vector<8x8xbf16>
    %67 = vector.extract_strided_slice %8 {offsets = [0, 56], sizes = [8, 8], strides = [1, 1]} : vector<8x96xbf16> to vector<8x8xbf16>
    %68 = vector.extract_strided_slice %8 {offsets = [0, 88], sizes = [8, 8], strides = [1, 1]} : vector<8x96xbf16> to vector<8x8xbf16>
    %cst_25 = arith.constant dense<0.000000e+00> : vector<8x8xf32>
    %69 = tpu.matmul %66, %67, %cst_25 {dimension_numbers = #tpu.dot_dimension_numbers<[1], [1], [0], [0], [0, 0, 1, 0], [], []>} : vector<8x8xbf16>, vector<8x8xbf16>, vector<8x8xf32> -> vector<8x8xf32>
    %cst_26 = arith.constant 0.353553385 : f32
    %70 = vector.broadcast %cst_26 : f32 to vector<8x8xf32>
    %71 = arith.mulf %69, %70 : vector<8x8xf32>
    %cst_27 = arith.constant dense<0xFF800000> : vector<8xf32>
    %72 = vector.multi_reduction <maximumf>, %71, %cst_27 [1] : vector<8x8xf32> to vector<8xf32>
    %73 = vector.shape_cast %72 : vector<8xf32> to vector<8x1xf32>
    %74 = vector.broadcast %73 : vector<8x1xf32> to vector<8x8xf32>
    %75 = arith.subf %71, %74 : vector<8x8xf32>
    %76 = math.exp %75 : vector<8x8xf32>
    %cst_28 = arith.constant dense<0.000000e+00> : vector<8xf32>
    %77 = vector.multi_reduction <add>, %76, %cst_28 [1] : vector<8x8xf32> to vector<8xf32>
    %78 = vector.shape_cast %77 : vector<8xf32> to vector<8x1xf32>
    %79 = tpu.reciprocal %78 {approx = true} : vector<8x1xf32> -> vector<8x1xf32>
    %80 = vector.broadcast %79 : vector<8x1xf32> to vector<8x8xf32>
    %81 = arith.mulf %76, %80 : vector<8x8xf32>
    %82 = arith.truncf %81 : vector<8x8xf32> to vector<8x8xbf16>
    %cst_29 = arith.constant dense<0.000000e+00> : vector<8x8xf32>
    %83 = tpu.matmul %82, %68, %cst_29 {dimension_numbers = #tpu.dot_dimension_numbers<[1], [0], [0], [1], [0, 0, 1, 1], [], []>} : vector<8x8xbf16>, vector<8x8xbf16>, vector<8x8xf32> -> vector<8x8xf32>
    %c0_30 = arith.constant 0 : index
    %c24 = arith.constant 24 : index
    %84 = vector.load %arg9[%c0_30, %c24] : memref<8x32xf32, #tpu.memory_space<vmem>>, vector<8x8xf32>
    tpu.vector_store %arg9[%c0_30, %c24], %83 {strides = array<i32>} : memref<8x32xf32, #tpu.memory_space<vmem>>, vector<8x8xf32>,
    %c0_31 = arith.constant 0 : index
    %c0_32 = arith.constant 0 : index
    %85 = vector.load %arg9[%c0_31, %c0_32] : memref<8x32xf32, #tpu.memory_space<vmem>>, vector<8x32xf32>
    %86 = arith.truncf %85 : vector<8x32xf32> to vector<8x32xbf16>
    %c0_33 = arith.constant 0 : index
    %c0_34 = arith.constant 0 : index
    %87 = vector.load %arg4[%c0_33, %c0_34] : memref<32x32xbf16, #tpu.memory_space<vmem>>, vector<32x32xbf16>
    %cst_35 = arith.constant dense<0.000000e+00> : vector<8x32xf32>
    %88 = tpu.matmul %86, %87, %cst_35 {dimension_numbers = #tpu.dot_dimension_numbers<[1], [0], [0], [1], [0, 0, 1, 1], [], []>} : vector<8x32xbf16>, vector<32x32xbf16>, vector<8x32xf32> -> vector<8x32xf32>
    %c0_36 = arith.constant 0 : index
    %c0_37 = arith.constant 0 : index
    %89 = vector.load %arg5[%c0_36, %c0_37] : memref<1x32xf32, #tpu.memory_space<vmem>>, vector<1x32xf32>
    %90 = vector.broadcast %89 : vector<1x32xf32> to vector<8x32xf32>
    %91 = arith.addf %88, %90 : vector<8x32xf32>
    %92 = arith.addf %1, %91 : vector<8x32xf32>
    %cst_38 = arith.constant dense<0.000000e+00> : vector<8xf32>
    %93 = vector.multi_reduction <add>, %92, %cst_38 [1] : vector<8x32xf32> to vector<8xf32>
    %94 = vector.shape_cast %93 : vector<8xf32> to vector<8x1xf32>
    %cst_39 = arith.constant 3.200000e+01 : f32
    %95 = vector.broadcast %cst_39 : f32 to vector<8x1xf32>
    %96 = arith.divf %94, %95 : vector<8x1xf32>
    %97 = vector.broadcast %96 : vector<8x1xf32> to vector<8x32xf32>
    %98 = arith.subf %92, %97 : vector<8x32xf32>
    %99 = arith.mulf %98, %98 : vector<8x32xf32>
    %cst_40 = arith.constant dense<0.000000e+00> : vector<8xf32>
    %100 = vector.multi_reduction <add>, %99, %cst_40 [1] : vector<8x32xf32> to vector<8xf32>
    %101 = vector.shape_cast %100 : vector<8xf32> to vector<8x1xf32>
    %cst_41 = arith.constant 3.200000e+01 : f32
    %102 = vector.broadcast %cst_41 : f32 to vector<8x1xf32>
    %103 = arith.divf %101, %102 : vector<8x1xf32>
    %cst_42 = arith.constant 9.99999974E-6 : f32
    %104 = vector.broadcast %cst_42 : f32 to vector<8x1xf32>
    %105 = arith.addf %103, %104 : vector<8x1xf32>
    %106 = math.rsqrt %105 : vector<8x1xf32>
    %107 = vector.broadcast %106 : vector<8x1xf32> to vector<8x32xf32>
    %108 = arith.mulf %98, %107 : vector<8x32xf32>
    %c0_43 = arith.constant 0 : index
    %c0_44 = arith.constant 0 : index
    %109 = vector.load %arg6[%c0_43, %c0_44] : memref<1x32xf32, #tpu.memory_space<vmem>>, vector<1x32xf32>
    %110 = vector.broadcast %109 : vector<1x32xf32> to vector<8x32xf32>
    %111 = arith.mulf %108, %110 : vector<8x32xf32>
    %c0_45 = arith.constant 0 : index
    %c0_46 = arith.constant 0 : index
    %112 = vector.load %arg7[%c0_45, %c0_46] : memref<1x32xf32, #tpu.memory_space<vmem>>, vector<1x32xf32>
    %113 = vector.broadcast %112 : vector<1x32xf32> to vector<8x32xf32>
    %114 = arith.addf %111, %113 : vector<8x32xf32>
    %c0_47 = arith.constant 0 : index
    %c0_48 = arith.constant 0 : index
    %c0_49 = arith.constant 0 : index
    %115 = vector.load %arg8[%c0_47, %c0_48, %c0_49] : memref<1x8x32xf32, #tpu.memory_space<vmem>>, vector<1x8x32xf32>
    %116 = vector.shape_cast %115 : vector<1x8x32xf32> to vector<8x32xf32>
    %117 = vector.shape_cast %114 : vector<8x32xf32> to vector<1x8x32xf32>
    tpu.vector_store %arg8[%c0_47, %c0_48, %c0_49], %117 {strides = array<i32>} : memref<1x8x32xf32, #tpu.memory_space<vmem>>, vector<1x8x32xf32>,
    return
  }
  func.func @transform_0(%arg0: i32) -> (i32, i32, i32) {
    %c0_i32 = arith.constant 0 : i32
    %c0_i32_0 = arith.constant 0 : i32
    %c0_i32_1 = arith.constant 0 : i32
    return %arg0, %c0_i32, %c0_i32_0 : i32, i32, i32
  }
  func.func @transform_1(%arg0: i32) -> (i32, i32) {
    %c0_i32 = arith.constant 0 : i32
    %c0_i32_0 = arith.constant 0 : i32
    %c0_i32_1 = arith.constant 0 : i32
    return %c0_i32, %c0_i32_0 : i32, i32
  }
  func.func @transform_2(%arg0: i32) -> (i32, i32) {
    %c0_i32 = arith.constant 0 : i32
    %c0_i32_0 = arith.constant 0 : i32
    %c0_i32_1 = arith.constant 0 : i32
    return %c0_i32, %c0_i32_0 : i32, i32
  }
  func.func @transform_3(%arg0: i32) -> (i32, i32) {
    %c0_i32 = arith.constant 0 : i32
    %c0_i32_0 = arith.constant 0 : i32
    %c0_i32_1 = arith.constant 0 : i32
    return %c0_i32, %c0_i32_0 : i32, i32
  }
  func.func @transform_4(%arg0: i32) -> (i32, i32) {
    %c0_i32 = arith.constant 0 : i32
    %c0_i32_0 = arith.constant 0 : i32
    %c0_i32_1 = arith.constant 0 : i32
    return %c0_i32, %c0_i32_0 : i32, i32
  }
  func.func @transform_5(%arg0: i32) -> (i32, i32) {
    %c0_i32 = arith.constant 0 : i32
    %c0_i32_0 = arith.constant 0 : i32
    %c0_i32_1 = arith.constant 0 : i32
    return %c0_i32, %c0_i32_0 : i32, i32
  }
  func.func @transform_6(%arg0: i32) -> (i32, i32) {
    %c0_i32 = arith.constant 0 : i32
    %c0_i32_0 = arith.constant 0 : i32
    %c0_i32_1 = arith.constant 0 : i32
    return %c0_i32, %c0_i32_0 : i32, i32
  }
  func.func @transform_7(%arg0: i32) -> (i32, i32, i32) {
    %c0_i32 = arith.constant 0 : i32
    %c0_i32_0 = arith.constant 0 : i32
    %c0_i32_1 = arith.constant 0 : i32
    return %arg0, %c0_i32, %c0_i32_0 : i32, i32, i32
  }
}

module attributes {stable_mosaic.version = 11 : i64} {
  func.func @_ffn_block_kernel(%arg0: i32, %arg1: i32, %arg2: memref<16x32xf32, #tpu.memory_space<vmem>>, %arg3: memref<32x64xbf16, #tpu.memory_space<vmem>>, %arg4: memref<1x64xf32, #tpu.memory_space<vmem>>, %arg5: memref<64x32xbf16, #tpu.memory_space<vmem>>, %arg6: memref<1x32xf32, #tpu.memory_space<vmem>>, %arg7: memref<1x32xf32, #tpu.memory_space<vmem>>, %arg8: memref<1x32xf32, #tpu.memory_space<vmem>>, %arg9: memref<16x32xf32, #tpu.memory_space<vmem>>, %arg10: memref<16x32xf32, #tpu.memory_space<vmem>>) attributes {dimension_semantics = [#tpu.dimension_semantics<parallel>, #tpu.dimension_semantics<arbitrary>], iteration_bounds = array<i64: 1, 1>, scalar_prefetch = 0 : i64, scratch_operands = 1 : i64, tpu.core_type = #tpu.core_type<tc>, window_params = [{transform_indices = @transform_0, window_bounds = array<i64: 16, 32>}, {transform_indices = @transform_1, window_bounds = array<i64: 32, 64>}, {transform_indices = @transform_2, window_bounds = array<i64: 1, 64>}, {transform_indices = @transform_3, window_bounds = array<i64: 64, 32>}, {pipeline_mode = #tpu.pipeline_mode<synchronous>, transform_indices = @transform_4, window_bounds = array<i64: 1, 32>}, {pipeline_mode = #tpu.pipeline_mode<synchronous>, transform_indices = @transform_5, window_bounds = array<i64: 1, 32>}, {pipeline_mode = #tpu.pipeline_mode<synchronous>, transform_indices = @transform_6, window_bounds = array<i64: 1, 32>}, {transform_indices = @transform_7, window_bounds = array<i64: 16, 32>}]} {
    %c0_i32 = arith.constant 0 : i32
    %0 = arith.cmpi eq, %arg1, %c0_i32 : i32
    %1 = arith.extui %0 : i1 to i32
    %c0_i32_0 = arith.constant 0 : i32
    %2 = arith.cmpi ne, %1, %c0_i32_0 : i32
    scf.if %2 {
      %cst_16 = arith.constant 0.000000e+00 : f32
      %21 = vector.broadcast %cst_16 : f32 to vector<16x32xf32>
      %c0_17 = arith.constant 0 : index
      %c0_18 = arith.constant 0 : index
      %22 = vector.load %arg10[%c0_17, %c0_18] : memref<16x32xf32, #tpu.memory_space<vmem>>, vector<16x32xf32>
      tpu.vector_store %arg10[%c0_17, %c0_18], %21 {strides = array<i32>} : memref<16x32xf32, #tpu.memory_space<vmem>>, vector<16x32xf32>,
    } else {
    }
    %c0 = arith.constant 0 : index
    %c0_1 = arith.constant 0 : index
    %3 = vector.load %arg2[%c0, %c0_1] : memref<16x32xf32, #tpu.memory_space<vmem>>, vector<16x32xf32>
    %4 = arith.truncf %3 : vector<16x32xf32> to vector<16x32xbf16>
    %c0_2 = arith.constant 0 : index
    %c0_3 = arith.constant 0 : index
    %5 = vector.load %arg3[%c0_2, %c0_3] : memref<32x64xbf16, #tpu.memory_space<vmem>>, vector<32x64xbf16>
    %cst = arith.constant dense<0.000000e+00> : vector<16x64xf32>
    %6 = tpu.matmul %4, %5, %cst {dimension_numbers = #tpu.dot_dimension_numbers<[1], [0], [0], [1], [0, 0, 1, 1], [], []>} : vector<16x32xbf16>, vector<32x64xbf16>, vector<16x64xf32> -> vector<16x64xf32>
    %c0_4 = arith.constant 0 : index
    %c0_5 = arith.constant 0 : index
    %7 = vector.load %arg4[%c0_4, %c0_5] : memref<1x64xf32, #tpu.memory_space<vmem>>, vector<1x64xf32>
    %8 = vector.broadcast %7 : vector<1x64xf32> to vector<16x64xf32>
    %9 = arith.addf %6, %8 : vector<16x64xf32>
    %cst_6 = arith.constant 0.000000e+00 : f32
    %10 = vector.broadcast %cst_6 : f32 to vector<16x64xf32>
    %11 = arith.maximumf %9, %10 : vector<16x64xf32>
    %c0_7 = arith.constant 0 : index
    %c0_8 = arith.constant 0 : index
    %12 = vector.load %arg10[%c0_7, %c0_8] : memref<16x32xf32, #tpu.memory_space<vmem>>, vector<16x32xf32>
    %13 = arith.truncf %11 : vector<16x64xf32> to vector<16x64xbf16>
    %c0_9 = arith.constant 0 : index
    %c0_10 = arith.constant 0 : index
    %14 = vector.load %arg5[%c0_9, %c0_10] : memref<64x32xbf16, #tpu.memory_space<vmem>>, vector<64x32xbf16>
    %cst_11 = arith.constant dense<0.000000e+00> : vector<16x32xf32>
    %15 = tpu.matmul %13, %14, %cst_11 {dimension_numbers = #tpu.dot_dimension_numbers<[1], [0], [0], [1], [0, 0, 1, 1], [], []>} : vector<16x64xbf16>, vector<64x32xbf16>, vector<16x32xf32> -> vector<16x32xf32>
    %16 = arith.addf %12, %15 : vector<16x32xf32>
    %c0_12 = arith.constant 0 : index
    %c0_13 = arith.constant 0 : index
    %17 = vector.load %arg10[%c0_12, %c0_13] : memref<16x32xf32, #tpu.memory_space<vmem>>, vector<16x32xf32>
    tpu.vector_store %arg10[%c0_12, %c0_13], %16 {strides = array<i32>} : memref<16x32xf32, #tpu.memory_space<vmem>>, vector<16x32xf32>,
    %c0_i32_14 = arith.constant 0 : i32
    %18 = arith.cmpi eq, %arg1, %c0_i32_14 : i32
    %19 = arith.extui %18 : i1 to i32
    %c0_i32_15 = arith.constant 0 : i32
    %20 = arith.cmpi ne, %19, %c0_i32_15 : i32
    scf.if %20 {
      %c0_16 = arith.constant 0 : index
      %c0_17 = arith.constant 0 : index
      %21 = vector.load %arg2[%c0_16, %c0_17] : memref<16x32xf32, #tpu.memory_space<vmem>>, vector<16x32xf32>
      %c0_18 = arith.constant 0 : index
      %c0_19 = arith.constant 0 : index
      %22 = vector.load %arg10[%c0_18, %c0_19] : memref<16x32xf32, #tpu.memory_space<vmem>>, vector<16x32xf32>
      %23 = arith.addf %21, %22 : vector<16x32xf32>
      %c0_20 = arith.constant 0 : index
      %c0_21 = arith.constant 0 : index
      %24 = vector.load %arg6[%c0_20, %c0_21] : memref<1x32xf32, #tpu.memory_space<vmem>>, vector<1x32xf32>
      %25 = vector.broadcast %24 : vector<1x32xf32> to vector<16x32xf32>
      %26 = arith.addf %23, %25 : vector<16x32xf32>
      %cst_22 = arith.constant dense<0.000000e+00> : vector<16xf32>
      %27 = vector.multi_reduction <add>, %26, %cst_22 [1] : vector<16x32xf32> to vector<16xf32>
      %28 = vector.shape_cast %27 : vector<16xf32> to vector<16x1xf32>
      %cst_23 = arith.constant 3.200000e+01 : f32
      %29 = vector.broadcast %cst_23 : f32 to vector<16x1xf32>
      %30 = arith.divf %28, %29 : vector<16x1xf32>
      %31 = vector.broadcast %30 : vector<16x1xf32> to vector<16x32xf32>
      %32 = arith.subf %26, %31 : vector<16x32xf32>
      %33 = arith.mulf %32, %32 : vector<16x32xf32>
      %cst_24 = arith.constant dense<0.000000e+00> : vector<16xf32>
      %34 = vector.multi_reduction <add>, %33, %cst_24 [1] : vector<16x32xf32> to vector<16xf32>
      %35 = vector.shape_cast %34 : vector<16xf32> to vector<16x1xf32>
      %cst_25 = arith.constant 3.200000e+01 : f32
      %36 = vector.broadcast %cst_25 : f32 to vector<16x1xf32>
      %37 = arith.divf %35, %36 : vector<16x1xf32>
      %cst_26 = arith.constant 9.99999974E-6 : f32
      %38 = vector.broadcast %cst_26 : f32 to vector<16x1xf32>
      %39 = arith.addf %37, %38 : vector<16x1xf32>
      %40 = math.rsqrt %39 : vector<16x1xf32>
      %41 = vector.broadcast %40 : vector<16x1xf32> to vector<16x32xf32>
      %42 = arith.mulf %32, %41 : vector<16x32xf32>
      %c0_27 = arith.constant 0 : index
      %c0_28 = arith.constant 0 : index
      %43 = vector.load %arg7[%c0_27, %c0_28] : memref<1x32xf32, #tpu.memory_space<vmem>>, vector<1x32xf32>
      %44 = vector.broadcast %43 : vector<1x32xf32> to vector<16x32xf32>
      %45 = arith.mulf %42, %44 : vector<16x32xf32>
      %c0_29 = arith.constant 0 : index
      %c0_30 = arith.constant 0 : index
      %46 = vector.load %arg8[%c0_29, %c0_30] : memref<1x32xf32, #tpu.memory_space<vmem>>, vector<1x32xf32>
      %47 = vector.broadcast %46 : vector<1x32xf32> to vector<16x32xf32>
      %48 = arith.addf %45, %47 : vector<16x32xf32>
      %c0_31 = arith.constant 0 : index
      %c0_32 = arith.constant 0 : index
      %49 = vector.load %arg9[%c0_31, %c0_32] : memref<16x32xf32, #tpu.memory_space<vmem>>, vector<16x32xf32>
      tpu.vector_store %arg9[%c0_31, %c0_32], %48 {strides = array<i32>} : memref<16x32xf32, #tpu.memory_space<vmem>>, vector<16x32xf32>,
    } else {
    }
    return
  }
  func.func @transform_0(%arg0: i32, %arg1: i32) -> (i32, i32) {
    %c0_i32 = arith.constant 0 : i32
    %c0_i32_0 = arith.constant 0 : i32
    return %arg0, %c0_i32 : i32, i32
  }
  func.func @transform_1(%arg0: i32, %arg1: i32) -> (i32, i32) {
    %c0_i32 = arith.constant 0 : i32
    %c0_i32_0 = arith.constant 0 : i32
    return %c0_i32, %arg1 : i32, i32
  }
  func.func @transform_2(%arg0: i32, %arg1: i32) -> (i32, i32) {
    %c0_i32 = arith.constant 0 : i32
    %c0_i32_0 = arith.constant 0 : i32
    return %c0_i32, %arg1 : i32, i32
  }
  func.func @transform_3(%arg0: i32, %arg1: i32) -> (i32, i32) {
    %c0_i32 = arith.constant 0 : i32
    %c0_i32_0 = arith.constant 0 : i32
    return %arg1, %c0_i32 : i32, i32
  }
  func.func @transform_4(%arg0: i32, %arg1: i32) -> (i32, i32) {
    %c0_i32 = arith.constant 0 : i32
    %c0_i32_0 = arith.constant 0 : i32
    %c0_i32_1 = arith.constant 0 : i32
    return %c0_i32, %c0_i32_0 : i32, i32
  }
  func.func @transform_5(%arg0: i32, %arg1: i32) -> (i32, i32) {
    %c0_i32 = arith.constant 0 : i32
    %c0_i32_0 = arith.constant 0 : i32
    %c0_i32_1 = arith.constant 0 : i32
    return %c0_i32, %c0_i32_0 : i32, i32
  }
  func.func @transform_6(%arg0: i32, %arg1: i32) -> (i32, i32) {
    %c0_i32 = arith.constant 0 : i32
    %c0_i32_0 = arith.constant 0 : i32
    %c0_i32_1 = arith.constant 0 : i32
    return %c0_i32, %c0_i32_0 : i32, i32
  }
  func.func @transform_7(%arg0: i32, %arg1: i32) -> (i32, i32) {
    %c0_i32 = arith.constant 0 : i32
    %c0_i32_0 = arith.constant 0 : i32
    return %arg0, %c0_i32 : i32, i32
  }
}

</mosaic_0001>

<llo_original>
// kernel: tpu_custom_call.1
$region0: #{tpu_custom_call.1}
  #allocation0 [shape = 'u32[]', space=smem, size = 0x4, offset = 0x4, fixed_abs, tag = 'smem constant byte address 0x4 - core index']
  #allocation1 [shape = 'u32[144,128]{1,0:T(1,128)}', space=vmem, size = 0x12000, scoped, tag = 'internal scratch']
  %s0 = inlined_call_operand.hbm [shape: f32[8,128], index: 0, kind: input, shape index: {}]
  %s1 = inlined_call_operand.hbm [shape: f32[16,128], index: 1, kind: output, shape index: {}]
  %s2 = sld [smem:[#allocation0]]
  $region41: #{tpu_custom_call.1} parent=0
    _
  %s4 = ssub.s32 1, %s2
  %s5 = scalar_select 0, %s4, %s2
  $region1: #{tpu_custom_call.1} parent=0
    #allocation2 [shape = 'u8[4096]{0}', space=vmem, size = 0x1000, scoped, tag = 'input window, operand 0, single buffered']
    #allocation3 [shape = 's32[2]{0}', space=sflag, size = 0x8, scoped, tag = 'scoped memory for tpu_custom_call.1']
    #allocation4 [shape = 's32[2]{0}', space=sflag, size = 0x8, scoped, tag = 'scoped memory for tpu_custom_call.1']
    #allocation5 [shape = 'u8[8192]{0}', space=vmem, size = 0x2000, scoped, tag = 'output window, operand 0']
    %6 = vsyncpa [#allocation3], 0
    %7 = vsyncpa [#allocation4], 0
    %s8 = scalar_lea.sflag [#allocation4], 1
    %9 = vsyncpa %s8, 0
    loop: start=0, step=1, limit=4
    $region2: #{tpu_custom_call.1} parent=1 // loop_pre_header
      _
    $region3: #{tpu_custom_call.1} parent=1 // loop_header
      %s11 = sphi 0, %s15
      %p12 = scmp.ge.s32.totalorder %s11, 4
      %s19 = sphi 0, %s19
      %s21 = sphi 0, %s19
      %s22 = sphi 0, %s21
      %s36 = sphi 0, %s22
      %s42 = sphi 0, %s44
      %s45 = sphi 0, %s42
      %s46 = sphi 0, %s45
      %s62 = sphi 0, %s46
    $region4: #{tpu_custom_call.1} parent=1 // loop_header_branch
      %14 = sbr.rel (%p12) target = $region8
    $region5: #{tpu_custom_call.1} parent=1 // loop_body
      %s16 = ssub.s32 %s11, 1
      %s17 = ssub.s32 %s11, 2
      %s18 = sadd.s32 %s11, 1
      %s20 = sadd.s32 %s19, 1
      %p23 = scmp.eq.s32.totalorder %s11, 1
      %p24 = scmp.ne.s32.totalorder %s19, %s21
      %p25 = scmp.eq.s32.totalorder %s11, 0
      %p26 = por %p24, %p25
      %p27 = scmp.ne.s32.totalorder %s19, %s21
      %p28 = scmp.eq.s32.totalorder %s16, 1
      %p29 = por %p27, %p28
      %p30 = scmp.ne.s32.totalorder %s21, %s22
      %p31 = scmp.eq.s32.totalorder %s16, 0
      %p32 = por %p30, %p31
      %p33 = scmp.ne.s32.totalorder %s21, %s22
      %p34 = scmp.eq.s32.totalorder %s17, 1
      %p35 = por %p33, %p34
      %p37 = scmp.ne.s32.totalorder %s22, %s36
      %p38 = scmp.eq.s32.totalorder %s17, 0
      %p39 = por %p37, %p38
      %s40 = ssub.s32 %s11, %s18
      %p41 = scmp.eq.s32.totalorder %s40, 0
      %s43 = sadd.s32 %s42, 1
      %s44 = scalar_select %p41, %s42, %s43
      %p47 = pneg %p41
      %p48 = scmp.eq.s32.totalorder %s11, 1
      %p49 = por %p47, %p48
      %p50 = scmp.ne.s32.totalorder %s42, %s45
      %p51 = scmp.eq.s32.totalorder %s11, 0
      %p52 = por %p50, %p51
      %p53 = scmp.ne.s32.totalorder %s42, %s45
      %p54 = scmp.eq.s32.totalorder %s16, 1
      %p55 = por %p53, %p54
      %p56 = scmp.ne.s32.totalorder %s45, %s46
      %p57 = scmp.eq.s32.totalorder %s16, 0
      %p58 = por %p56, %p57
      %p59 = scmp.ne.s32.totalorder %s45, %s46
      %p60 = scmp.eq.s32.totalorder %s17, 1
      %p61 = por %p59, %p60
      %p63 = scmp.ne.s32.totalorder %s46, %s62
      %p64 = scmp.eq.s32.totalorder %s17, 0
      %p65 = por %p63, %p64
      %p66 = scmp.le.s32.totalorder 1, %s11
      %p67 = scmp.lt.s32.totalorder %s11, 3
      %p68 = pnand %p66, %p67
      %p69 = pneg %p68
      // Predicated region
      $region9: #{tpu_custom_call.1} parent=5 // pred_check
        _
      $region10: #{tpu_custom_call.1} parent=5 // pred_check_branch
        %71 = sbr.rel (%p68) target = $region12
      $region11: #{tpu_custom_call.1} parent=5 // pred_region
        %s72 = ssub.s32 %s11, 1
        // Predicated region
        $region13: #{tpu_custom_call.1} parent=11 // pred_check
          %p73 = pneg %p32
        $region14: #{tpu_custom_call.1} parent=11 // pred_check_branch
          %75 = sbr.rel (%p73) target = $region16
        $region15: #{tpu_custom_call.1} parent=11 // pred_region
          %s77 = ssub.s32 128, 128
          %78 = vsyncadd [#allocation3], %s77
          %s80 = sshll.u32 [#allocation2], 4
          %s81 = int_to_ptr.vmem [resolvable:$true] %s80
          %83 = dma.hbm_to_vmem [thread:$0]  %s0, 128, %s81, [#allocation3]
        $region16: #{tpu_custom_call.1} parent=11 // pred_fallthru
          _
      $region12: #{tpu_custom_call.1} parent=5 // pred_fallthru
        _
      %p84 = scmp.lt.s32.totalorder %s11, 2
      // Predicated region
      $region17: #{tpu_custom_call.1} parent=5 // pred_check
        %p85 = pneg %p84
      $region18: #{tpu_custom_call.1} parent=5 // pred_check_branch
        %87 = sbr.rel (%p85) target = $region20
      $region19: #{tpu_custom_call.1} parent=5 // pred_region
        _
      $region20: #{tpu_custom_call.1} parent=5 // pred_fallthru
        _
      %p88 = scmp.le.s32.totalorder 1, %s11
      %p89 = scmp.lt.s32.totalorder %s11, 3
      %p90 = pnand %p88, %p89
      %p91 = pneg %p90
      // Predicated region
      $region21: #{tpu_custom_call.1} parent=5 // pred_check
        _
      $region22: #{tpu_custom_call.1} parent=5 // pred_check_branch
        %93 = sbr.rel (%p90) target = $region24
      $region23: #{tpu_custom_call.1} parent=5 // pred_region
        %s94 = ssub.s32 %s11, 1
        // Predicated region
        $region25: #{tpu_custom_call.1} parent=23 // pred_check
          %p95 = pneg %p32
        $region26: #{tpu_custom_call.1} parent=23 // pred_check_branch
          %97 = sbr.rel (%p95) target = $region28
        $region27: #{tpu_custom_call.1} parent=23 // pred_region
          %98 = dma.done [#allocation3], 128
        $region28: #{tpu_custom_call.1} parent=23 // pred_fallthru
          _
        %p99 = pneg %p32
        %p100 = pneg %p29
        %p101 = pneg %p58
        %p102 = pneg %p55
        %s103 = sand.u32 %s45, 1
        %s104 = scalar_lea.sflag [#allocation4], %s103
        %s105 = sand.u32 %s45, 1
        %s106 = smul.addr %s105, 8
        %s107 = scalar_lea.vmem [#allocation5], %s106
        %v108 = vld [vmem:[#allocation2] sm:$0xff]
        %v109 = vmul.f32 %v108, 2.0
        %110 = vst [vmem:[%s107] sm:$0xff] %v109
        %s111 = sand.u32 %s45, 1
        %s112 = scalar_lea.sflag [#allocation4], %s111
        %s113 = sand.u32 %s45, 1
        %s114 = smul.addr %s113, 8
        %s115 = scalar_lea.vmem [#allocation5], %s114
        // Predicated region
        $region29: #{tpu_custom_call.1} parent=23 // pred_check
          %p116 = pneg %p55
        $region30: #{tpu_custom_call.1} parent=23 // pred_check_branch
          %118 = sbr.rel (%p116) target = $region32
        $region31: #{tpu_custom_call.1} parent=23 // pred_region
          %s120 = ssub.s32 128, 128
          %121 = vsyncadd %s112, %s120
          %s122 = smul.addr %s16, 128
          %s123 = scalar_lea.hbm %s1, %s122
          %s125 = sshll.u32 %s115, 4
          %s126 = int_to_ptr.vmem [resolvable:$true] %s125
          %128 = dma.vmem_to_hbm [thread:$0]  %s126, 128, %s123, %s112
        $region32: #{tpu_custom_call.1} parent=23 // pred_fallthru
          _
      $region24: #{tpu_custom_call.1} parent=5 // pred_fallthru
        _
      %p129 = scmp.le.s32.totalorder 2, %s11
      // Predicated region
      $region33: #{tpu_custom_call.1} parent=5 // pred_check
        %p130 = pneg %p129
      $region34: #{tpu_custom_call.1} parent=5 // pred_check_branch
        %132 = sbr.rel (%p130) target = $region36
      $region35: #{tpu_custom_call.1} parent=5 // pred_region
        %s133 = ssub.s32 %s11, 2
        // Predicated region
        $region37: #{tpu_custom_call.1} parent=35 // pred_check
          %p134 = pneg %p61
        $region38: #{tpu_custom_call.1} parent=35 // pred_check_branch
          %136 = sbr.rel (%p134) target = $region40
        $region39: #{tpu_custom_call.1} parent=35 // pred_region
          %s137 = sand.u32 %s46, 1
          %s138 = scalar_lea.sflag [#allocation4], %s137
          %s139 = sand.u32 %s46, 1
          %s140 = smul.addr %s139, 8
          %s141 = scalar_lea.vmem [#allocation5], %s140
          %142 = dma.done %s138, 128
        $region40: #{tpu_custom_call.1} parent=35 // pred_fallthru
          _
      $region36: #{tpu_custom_call.1} parent=5 // pred_fallthru
        _
    $region6: #{tpu_custom_call.1} parent=1 // loop_footer
      %s15 = sadd.s32 1, %s11
    $region7: #{tpu_custom_call.1} parent=1 // loop_footer_branch
      %10 = sbr.rel target = $region3
    $region8: #{tpu_custom_call.1} parent=1 // loop_exit
      _
    %143 = vsyncpa [#allocation3], 1
    %s144 = scalar_lea.sflag [#allocation3], 1
    %145 = vsyncpa %s144, 1
    %146 = vsyncpa [#allocation4], 1
    %s147 = scalar_lea.sflag [#allocation4], 1
    %148 = vsyncpa %s147, 1

// kernel: simple_llama_forward.9
$region0: #{simple_llama_forward.9}
  #allocation0 [shape = 'u32[]', space=smem, size = 0x4, offset = 0x4, fixed_abs, tag = 'smem constant byte address 0x4 - core index']
  #allocation1 [shape = 'u32[144,128]{1,0:T(1,128)}', space=vmem, size = 0x12000, scoped, tag = 'internal scratch']
  #allocation2 [shape = 'f32[16,50]{1,0:T(8,128)}', space=vmem, size = 0x2000, scoped, tag = 'scratch operand']
  %s0 = inlined_call_operand.vmem [shape: bf16[16,32], index: 0, kind: input, shape index: {}]
  %s1 = inlined_call_operand.vmem [shape: bf16[32,50], index: 1, kind: input, shape index: {}]
  %s2 = inlined_call_operand.vmem [shape: f32[1,50], index: 2, kind: input, shape index: {}]
  %s3 = inlined_call_operand.hbm [shape: f32[16,50], index: 3, kind: output, shape index: {}]
  %s4 = sld [smem:[#allocation0]]
  $region30: #{simple_llama_forward.9} parent=0
    _
  %s6 = ssub.s32 1, %s4
  %s7 = scalar_select 0, %s6, %s4
  $region1: #{simple_llama_forward.9} parent=0
    #allocation3 [shape = 'u8[8192]{0}', space=vmem, size = 0x2000, scoped, tag = 'output window, operand 0, single buffered']
    #allocation4 [shape = 's32[1]{0}', space=sflag, size = 0x4, scoped, tag = 'scoped memory for simple_llama_forward.9']
    %8 = vsyncpa [#allocation4], 0
    // Predicated region
    $region2: #{simple_llama_forward.9} parent=1 // pred_check
      _
    $region3: #{simple_llama_forward.9} parent=1 // pred_check_branch
      %10 = sbr.rel (0) target = $region5
    $region4: #{simple_llama_forward.9} parent=1 // pred_region
      _
    $region5: #{simple_llama_forward.9} parent=1 // pred_fallthru
      _
    // Predicated region
    $region6: #{simple_llama_forward.9} parent=1 // pred_check
      _
    $region7: #{simple_llama_forward.9} parent=1 // pred_check_branch
      %12 = sbr.rel (0) target = $region9
    $region8: #{simple_llama_forward.9} parent=1 // pred_region
      _
    $region9: #{simple_llama_forward.9} parent=1 // pred_fallthru
      _
    // Predicated region
    $region10: #{simple_llama_forward.9} parent=1 // pred_check
      _
    $region11: #{simple_llama_forward.9} parent=1 // pred_check_branch
      %14 = sbr.rel (0) target = $region13
    $region12: #{simple_llama_forward.9} parent=1 // pred_region
      _
    $region13: #{simple_llama_forward.9} parent=1 // pred_fallthru
      _
    %p16 = scmp.eq.s32.totalorder 0, 0
    // Predicated region
    $region14: #{simple_llama_forward.9} parent=1 // pred_check
      %p17 = pneg %p16
    $region15: #{simple_llama_forward.9} parent=1 // pred_check_branch
      %19 = sbr.rel (%p17) target = $region17
    $region16: #{simple_llama_forward.9} parent=1 // pred_region
      %vm20 = vcmask 408576
      %21 = vst.msk [vmem:[#allocation2] sm:$0xff] %vm20, 0.0
      %22 = vst.msk [vmem:[#allocation2 + $0x8] sm:$0xff] %vm20, 0.0
    $region17: #{simple_llama_forward.9} parent=1 // pred_fallthru
      _
    %v23 = vld [vmem:[#allocation2] sm:$0xff]
    %v24 = vld [vmem:[#allocation2 + $0x8] sm:$0xff]
    %v25 = vld [vmem:[%s0] sm:$0xf]
    %v26 = vld [vmem:[%s0 + $0x4] sm:$0xf]
    %v27 = vld [vmem:[%s1] sm:$0xf]
    %v28 = vld [vmem:[%s1 + $0x4] sm:$0xf]
    %v29 = vld [vmem:[%s1 + $0x8] sm:$0xf]
    %v30 = vld [vmem:[%s1 + $0xc] sm:$0xf]
    %v33 = vunpack.c.l.b16 %v25
    %v34 = vunpack.c.l.b16 %v26
    %v35 = vpack.c.b16 %v34, %v33
    %v40 = vunpack.c.l.b16 %v27
    %v41 = vunpack.c.l.b16 %v28
    %v42 = vunpack.c.l.b16 %v29
    %v43 = vunpack.c.l.b16 %v30
    %v44 = vpack.c.b16 %v41, %v40
    %v45 = vpack.c.b16 %v43, %v42
    %vm48 = vcmask 261120
    %v50 = vsel %vm48, %v35, 0
    %52 = vmatprep.subr.bf16.mxu0 0
    %53 = vmatpush1.bf16.msra.mxu0 %v44
    %54 = vmatprep.subr.bf16.mxu0 0
    %55 = vmatpush1.bf16.msra.mxu0 %v45
    %56 = vmatprep.subr.bf16.mxu0 0
    %57 = vmatpush1.bf16.msra.mxu0 0
    %58 = vmatprep.subr.bf16.mxu0 0
    %59 = vmatpush1.bf16.msra.mxu0 0
    %60 = vmatprep.subr.bf16.mxu0 0
    %61 = vmatpush1.bf16.msra.mxu0 0
    %62 = vmatprep.subr.bf16.mxu0 0
    %63 = vmatpush1.bf16.msra.mxu0 0
    %64 = vmatprep.subr.bf16.mxu0 0
    %65 = vmatpush1.bf16.msra.mxu0 0
    %66 = vmatprep.subr.bf16.mxu0 0
    %67 = vmatpush1.bf16.msra.mxu0 0
    %68 = vmatprep.subr.bf16.mxu0 0
    %69 = vmatpush1.bf16.msra.mxu0 0
    %70 = vmatprep.subr.bf16.mxu0 0
    %71 = vmatpush1.bf16.msra.mxu0 0
    %72 = vmatprep.subr.bf16.mxu0 0
    %73 = vmatpush1.bf16.msra.mxu0 0
    %74 = vmatprep.subr.bf16.mxu0 0
    %75 = vmatpush1.bf16.msra.mxu0 0
    %76 = vmatprep.subr.bf16.mxu0 0
    %77 = vmatpush1.bf16.msra.mxu0 0
    %78 = vmatprep.subr.bf16.mxu0 0
    %79 = vmatpush1.bf16.msra.mxu0 0
    %80 = vmatprep.subr.bf16.mxu0 0
    %81 = vmatpush1.bf16.msra.mxu0 0
    %82 = vmatprep.subr.bf16.mxu0 0
    %83 = vmatpush1.bf16.msra.mxu0 0
    %84 = vmatprep.mubr.bf16.mxu0 0
    %85 = vmatmul.mubr.bf16.gmra.mrb[0].mxu0 %v50
    %v86 = vpop.f32.mrb[0].mxu0
    %v87 = vadd.f32 0.0, %v86
    %v88 = vpop.f32.mrb[0].mxu0
    %v89 = vpop.f32.mrb[0].mxu0
    %v90 = vadd.f32 0.0, %v89
    %v91 = vpop.f32.mrb[0].mxu0
    %92 = vdwg.mxu0
    %v93 = vadd.f32 %v23, %v87
    %v94 = vadd.f32 %v24, %v90
    %vm95 = vcmask 408576
    %96 = vst.msk [vmem:[#allocation2] sm:$0xff] %vm95, %v93
    %97 = vst.msk [vmem:[#allocation2 + $0x8] sm:$0xff] %vm95, %v94
    // Predicated region
    $region18: #{simple_llama_forward.9} parent=1 // pred_check
      %p98 = pneg %p16
    $region19: #{simple_llama_forward.9} parent=1 // pred_check_branch
      %100 = sbr.rel (%p98) target = $region21
    $region20: #{simple_llama_forward.9} parent=1 // pred_region
      %v101 = vld [vmem:[#allocation2] sm:$0xff]
      %v102 = vld [vmem:[#allocation2 + $0x8] sm:$0xff]
      %v103 = vld [vmem:[%s2] sm:$0x1]
      %v105 = vlaneseq
      %v106 = vshrl.u32 %v105, 7
      %v107 = vsub.s32 0, %v106
      %v108 = vrot.slane %v103, %v107
      %v110 = vadd.f32 %v101, %v108
      %v111 = vadd.f32 %v102, %v108
      %112 = vst.msk [vmem:[#allocation3] sm:$0xff] %vm95, %v110
      %113 = vst.msk [vmem:[#allocation3 + $0x8] sm:$0xff] %vm95, %v111
    $region21: #{simple_llama_forward.9} parent=1 // pred_fallthru
      _
    // Predicated region
    $region22: #{simple_llama_forward.9} parent=1 // pred_check
      _
    $region23: #{simple_llama_forward.9} parent=1 // pred_check_branch
      %115 = sbr.rel (0) target = $region25
    $region24: #{simple_llama_forward.9} parent=1 // pred_region
      %s117 = ssub.s32 256, 256
      %118 = vsyncadd [#allocation4], %s117
      %s119 = sshll.u32 [#allocation3], 4
      %s120 = int_to_ptr.vmem [resolvable:$true] %s119
      %125 = dma.vmem_to_hbm [thread:$0]  %s120, 256, %s3, [#allocation4], 128, 128, 8
    $region25: #{simple_llama_forward.9} parent=1 // pred_fallthru
      _
    // Predicated region
    $region26: #{simple_llama_forward.9} parent=1 // pred_check
      _
    $region27: #{simple_llama_forward.9} parent=1 // pred_check_branch
      %127 = sbr.rel (0) target = $region29
    $region28: #{simple_llama_forward.9} parent=1 // pred_region
      %128 = dma.done [#allocation4], 256
    $region29: #{simple_llama_forward.9} parent=1 // pred_fallthru
      _
    %129 = vsyncpa [#allocation4], 1

// kernel: simple_llama_forward.5
$region0: #{simple_llama_forward.5}
  #allocation0 [shape = 'u32[]', space=smem, size = 0x4, offset = 0x4, fixed_abs, tag = 'smem constant byte address 0x4 - core index']
  #allocation1 [shape = 'u32[144,128]{1,0:T(1,128)}', space=vmem, size = 0x12000, scoped, tag = 'internal scratch']
  #allocation2 [shape = 'f32[8,32]{1,0:T(8,128)}', space=vmem, size = 0x1000, scoped, tag = 'scratch operand']
  %s0 = inlined_call_operand.vmem [shape: f32[2,8,32], index: 0, kind: input, shape index: {}]
  %s1 = inlined_call_operand.vmem [shape: bf16[32,96], index: 1, kind: input, shape index: {}]
  %s2 = inlined_call_operand.vmem [shape: f32[1,96], index: 2, kind: input, shape index: {}]
  %s3 = inlined_call_operand.vmem [shape: bf16[32,32], index: 3, kind: input, shape index: {}]
  %s4 = inlined_call_operand.vmem [shape: f32[1,32], index: 4, kind: input, shape index: {}]
  %s5 = inlined_call_operand.vmem [shape: f32[1,32], index: 5, kind: input, shape index: {}]
  %s6 = inlined_call_operand.vmem [shape: f32[1,32], index: 6, kind: input, shape index: {}]
  %s7 = inlined_call_operand.vmem [shape: f32[2,8,32], index: 7, kind: output, shape index: {}]
  %s8 = sld [smem:[#allocation0]]
  $region61: #{simple_llama_forward.5} parent=0
    _
  %s10 = ssub.s32 1, %s8
  %s11 = scalar_select 0, %s10, %s8
  loop: start=0, step=1, limit=4
  $region2: #{simple_llama_forward.5} parent=0 // loop_pre_header
    _
  $region3: #{simple_llama_forward.5} parent=0 // loop_header
    %s13 = sphi 0, %s17
    %p14 = scmp.ge.s32.totalorder %s13, 4
    %s23 = sphi 0, %s25
    %s26 = sphi 0, %s23
    %s27 = sphi 0, %s26
    %s43 = sphi 0, %s27
    %s47 = sphi 0, %s47
    %s49 = sphi 0, %s47
    %s50 = sphi 0, %s49
    %s64 = sphi 0, %s50
    %s68 = sphi 0, %s68
    %s70 = sphi 0, %s68
    %s71 = sphi 0, %s70
    %s85 = sphi 0, %s71
    %s89 = sphi 0, %s89
    %s91 = sphi 0, %s89
    %s92 = sphi 0, %s91
    %s106 = sphi 0, %s92
    %s110 = sphi 0, %s110
    %s112 = sphi 0, %s110
    %s113 = sphi 0, %s112
    %s127 = sphi 0, %s113
    %s131 = sphi 0, %s131
    %s133 = sphi 0, %s131
    %s134 = sphi 0, %s133
    %s148 = sphi 0, %s134
    %s152 = sphi 0, %s152
    %s154 = sphi 0, %s152
    %s155 = sphi 0, %s154
    %s169 = sphi 0, %s155
    %s175 = sphi 0, %s177
    %s178 = sphi 0, %s175
    %s179 = sphi 0, %s178
    %s195 = sphi 0, %s179
  $region4: #{simple_llama_forward.5} parent=0 // loop_header_branch
    %16 = sbr.rel (%p14) target = $region8
  $region5: #{simple_llama_forward.5} parent=0 // loop_body
    %s18 = ssub.s32 %s13, 1
    %s19 = ssub.s32 %s13, 2
    %s20 = sadd.s32 %s13, 1
    %s21 = ssub.s32 %s13, %s20
    %p22 = scmp.eq.s32.totalorder %s21, 0
    %s24 = sadd.s32 %s23, 1
    %s25 = scalar_select %p22, %s23, %s24
    %p28 = pneg %p22
    %p29 = scmp.eq.s32.totalorder %s13, 1
    %p30 = por %p28, %p29
    %p31 = scmp.ne.s32.totalorder %s23, %s26
    %p32 = scmp.eq.s32.totalorder %s13, 0
    %p33 = por %p31, %p32
    %p34 = scmp.ne.s32.totalorder %s23, %s26
    %p35 = scmp.eq.s32.totalorder %s18, 1
    %p36 = por %p34, %p35
    %p37 = scmp.ne.s32.totalorder %s26, %s27
    %p38 = scmp.eq.s32.totalorder %s18, 0
    %p39 = por %p37, %p38
    %p40 = scmp.ne.s32.totalorder %s26, %s27
    %p41 = scmp.eq.s32.totalorder %s19, 1
    %p42 = por %p40, %p41
    %p44 = scmp.ne.s32.totalorder %s27, %s43
    %p45 = scmp.eq.s32.totalorder %s19, 0
    %p46 = por %p44, %p45
    %s48 = sadd.s32 %s47, 1
    %p51 = scmp.eq.s32.totalorder %s13, 1
    %p52 = scmp.ne.s32.totalorder %s47, %s49
    %p53 = scmp.eq.s32.totalorder %s13, 0
    %p54 = por %p52, %p53
    %p55 = scmp.ne.s32.totalorder %s47, %s49
    %p56 = scmp.eq.s32.totalorder %s18, 1
    %p57 = por %p55, %p56
    %p58 = scmp.ne.s32.totalorder %s49, %s50
    %p59 = scmp.eq.s32.totalorder %s18, 0
    %p60 = por %p58, %p59
    %p61 = scmp.ne.s32.totalorder %s49, %s50
    %p62 = scmp.eq.s32.totalorder %s19, 1
    %p63 = por %p61, %p62
    %p65 = scmp.ne.s32.totalorder %s50, %s64
    %p66 = scmp.eq.s32.totalorder %s19, 0
    %p67 = por %p65, %p66
    %s69 = sadd.s32 %s68, 1
    %p72 = scmp.eq.s32.totalorder %s13, 1
    %p73 = scmp.ne.s32.totalorder %s68, %s70
    %p74 = scmp.eq.s32.totalorder %s13, 0
    %p75 = por %p73, %p74
    %p76 = scmp.ne.s32.totalorder %s68, %s70
    %p77 = scmp.eq.s32.totalorder %s18, 1
    %p78 = por %p76, %p77
    %p79 = scmp.ne.s32.totalorder %s70, %s71
    %p80 = scmp.eq.s32.totalorder %s18, 0
    %p81 = por %p79, %p80
    %p82 = scmp.ne.s32.totalorder %s70, %s71
    %p83 = scmp.eq.s32.totalorder %s19, 1
    %p84 = por %p82, %p83
    %p86 = scmp.ne.s32.totalorder %s71, %s85
    %p87 = scmp.eq.s32.totalorder %s19, 0
    %p88 = por %p86, %p87
    %s90 = sadd.s32 %s89, 1
    %p93 = scmp.eq.s32.totalorder %s13, 1
    %p94 = scmp.ne.s32.totalorder %s89, %s91
    %p95 = scmp.eq.s32.totalorder %s13, 0
    %p96 = por %p94, %p95
    %p97 = scmp.ne.s32.totalorder %s89, %s91
    %p98 = scmp.eq.s32.totalorder %s18, 1
    %p99 = por %p97, %p98
    %p100 = scmp.ne.s32.totalorder %s91, %s92
    %p101 = scmp.eq.s32.totalorder %s18, 0
    %p102 = por %p100, %p101
    %p103 = scmp.ne.s32.totalorder %s91, %s92
    %p104 = scmp.eq.s32.totalorder %s19, 1
    %p105 = por %p103, %p104
    %p107 = scmp.ne.s32.totalorder %s92, %s106
    %p108 = scmp.eq.s32.totalorder %s19, 0
    %p109 = por %p107, %p108
    %s111 = sadd.s32 %s110, 1
    %p114 = scmp.eq.s32.totalorder %s13, 1
    %p115 = scmp.ne.s32.totalorder %s110, %s112
    %p116 = scmp.eq.s32.totalorder %s13, 0
    %p117 = por %p115, %p116
    %p118 = scmp.ne.s32.totalorder %s110, %s112
    %p119 = scmp.eq.s32.totalorder %s18, 1
    %p120 = por %p118, %p119
    %p121 = scmp.ne.s32.totalorder %s112, %s113
    %p122 = scmp.eq.s32.totalorder %s18, 0
    %p123 = por %p121, %p122
    %p124 = scmp.ne.s32.totalorder %s112, %s113
    %p125 = scmp.eq.s32.totalorder %s19, 1
    %p126 = por %p124, %p125
    %p128 = scmp.ne.s32.totalorder %s113, %s127
    %p129 = scmp.eq.s32.totalorder %s19, 0
    %p130 = por %p128, %p129
    %s132 = sadd.s32 %s131, 1
    %p135 = scmp.eq.s32.totalorder %s13, 1
    %p136 = scmp.ne.s32.totalorder %s131, %s133
    %p137 = scmp.eq.s32.totalorder %s13, 0
    %p138 = por %p136, %p137
    %p139 = scmp.ne.s32.totalorder %s131, %s133
    %p140 = scmp.eq.s32.totalorder %s18, 1
    %p141 = por %p139, %p140
    %p142 = scmp.ne.s32.totalorder %s133, %s134
    %p143 = scmp.eq.s32.totalorder %s18, 0
    %p144 = por %p142, %p143
    %p145 = scmp.ne.s32.totalorder %s133, %s134
    %p146 = scmp.eq.s32.totalorder %s19, 1
    %p147 = por %p145, %p146
    %p149 = scmp.ne.s32.totalorder %s134, %s148
    %p150 = scmp.eq.s32.totalorder %s19, 0
    %p151 = por %p149, %p150
    %s153 = sadd.s32 %s152, 1
    %p156 = scmp.eq.s32.totalorder %s13, 1
    %p157 = scmp.ne.s32.totalorder %s152, %s154
    %p158 = scmp.eq.s32.totalorder %s13, 0
    %p159 = por %p157, %p158
    %p160 = scmp.ne.s32.totalorder %s152, %s154
    %p161 = scmp.eq.s32.totalorder %s18, 1
    %p162 = por %p160, %p161
    %p163 = scmp.ne.s32.totalorder %s154, %s155
    %p164 = scmp.eq.s32.totalorder %s18, 0
    %p165 = por %p163, %p164
    %p166 = scmp.ne.s32.totalorder %s154, %s155
    %p167 = scmp.eq.s32.totalorder %s19, 1
    %p168 = por %p166, %p167
    %p170 = scmp.ne.s32.totalorder %s155, %s169
    %p171 = scmp.eq.s32.totalorder %s19, 0
    %p172 = por %p170, %p171
    %s173 = ssub.s32 %s13, %s20
    %p174 = scmp.eq.s32.totalorder %s173, 0
    %s176 = sadd.s32 %s175, 1
    %s177 = scalar_select %p174, %s175, %s176
    %p180 = pneg %p174
    %p181 = scmp.eq.s32.totalorder %s13, 1
    %p182 = por %p180, %p181
    %p183 = scmp.ne.s32.totalorder %s175, %s178
    %p184 = scmp.eq.s32.totalorder %s13, 0
    %p185 = por %p183, %p184
    %p186 = scmp.ne.s32.totalorder %s175, %s178
    %p187 = scmp.eq.s32.totalorder %s18, 1
    %p188 = por %p186, %p187
    %p189 = scmp.ne.s32.totalorder %s178, %s179
    %p190 = scmp.eq.s32.totalorder %s18, 0
    %p191 = por %p189, %p190
    %p192 = scmp.ne.s32.totalorder %s178, %s179
    %p193 = scmp.eq.s32.totalorder %s19, 1
    %p194 = por %p192, %p193
    %p196 = scmp.ne.s32.totalorder %s179, %s195
    %p197 = scmp.eq.s32.totalorder %s19, 0
    %p198 = por %p196, %p197
    %p199 = scmp.le.s32.totalorder 1, %s13
    %p200 = scmp.lt.s32.totalorder %s13, 3
    %p201 = pnand %p199, %p200
    %p202 = pneg %p201
    // Predicated region
    $region9: #{simple_llama_forward.5} parent=5 // pred_check
      _
    $region10: #{simple_llama_forward.5} parent=5 // pred_check_branch
      %204 = sbr.rel (%p201) target = $region12
    $region11: #{simple_llama_forward.5} parent=5 // pred_region
      %s205 = ssub.s32 %s13, 1
      // Predicated region
      $region13: #{simple_llama_forward.5} parent=11 // pred_check
        %p206 = pneg %p60
      $region14: #{simple_llama_forward.5} parent=11 // pred_check_branch
        %208 = sbr.rel (%p206) target = $region16
      $region15: #{simple_llama_forward.5} parent=11 // pred_region
        _
      $region16: #{simple_llama_forward.5} parent=11 // pred_fallthru
        _
      // Predicated region
      $region17: #{simple_llama_forward.5} parent=11 // pred_check
        %p209 = pneg %p81
      $region18: #{simple_llama_forward.5} parent=11 // pred_check_branch
        %211 = sbr.rel (%p209) target = $region20
      $region19: #{simple_llama_forward.5} parent=11 // pred_region
        _
      $region20: #{simple_llama_forward.5} parent=11 // pred_fallthru
        _
      // Predicated region
      $region21: #{simple_llama_forward.5} parent=11 // pred_check
        %p212 = pneg %p102
      $region22: #{simple_llama_forward.5} parent=11 // pred_check_branch
        %214 = sbr.rel (%p212) target = $region24
      $region23: #{simple_llama_forward.5} parent=11 // pred_region
        _
      $region24: #{simple_llama_forward.5} parent=11 // pred_fallthru
        _
      // Predicated region
      $region25: #{simple_llama_forward.5} parent=11 // pred_check
        %p215 = pneg %p123
      $region26: #{simple_llama_forward.5} parent=11 // pred_check_branch
        %217 = sbr.rel (%p215) target = $region28
      $region27: #{simple_llama_forward.5} parent=11 // pred_region
        _
      $region28: #{simple_llama_forward.5} parent=11 // pred_fallthru
        _
      // Predicated region
      $region29: #{simple_llama_forward.5} parent=11 // pred_check
        %p218 = pneg %p144
      $region30: #{simple_llama_forward.5} parent=11 // pred_check_branch
        %220 = sbr.rel (%p218) target = $region32
      $region31: #{simple_llama_forward.5} parent=11 // pred_region
        _
      $region32: #{simple_llama_forward.5} parent=11 // pred_fallthru
        _
      // Predicated region
      $region33: #{simple_llama_forward.5} parent=11 // pred_check
        %p221 = pneg %p165
      $region34: #{simple_llama_forward.5} parent=11 // pred_check_branch
        %223 = sbr.rel (%p221) target = $region36
      $region35: #{simple_llama_forward.5} parent=11 // pred_region
        _
      $region36: #{simple_llama_forward.5} parent=11 // pred_fallthru
        _
    $region12: #{simple_llama_forward.5} parent=5 // pred_fallthru
      _
    %p224 = scmp.lt.s32.totalorder %s13, 2
    // Predicated region
    $region37: #{simple_llama_forward.5} parent=5 // pred_check
      %p225 = pneg %p224
    $region38: #{simple_llama_forward.5} parent=5 // pred_check_branch
      %227 = sbr.rel (%p225) target = $region40
    $region39: #{simple_llama_forward.5} parent=5 // pred_region
      // Predicated region
      $region41: #{simple_llama_forward.5} parent=39 // pred_check
        %p228 = pneg %p33
      $region42: #{simple_llama_forward.5} parent=39 // pred_check_branch
        %230 = sbr.rel (%p228) target = $region44
      $region43: #{simple_llama_forward.5} parent=39 // pred_region
        %p231 = scmp.lt.s32.totalorder %s13, 1
        %s232 = scalar_select %p231, %s13, 1
        %s233 = smul.addr %s232, 8
        %s234 = scalar_lea.vmem %s0, %s233
      $region44: #{simple_llama_forward.5} parent=39 // pred_fallthru
        _
    $region40: #{simple_llama_forward.5} parent=5 // pred_fallthru
      _
    %p235 = scmp.le.s32.totalorder 1, %s13
    %p236 = scmp.lt.s32.totalorder %s13, 3
    %p237 = pnand %p235, %p236
    %p238 = pneg %p237
    // Predicated region
    $region45: #{simple_llama_forward.5} parent=5 // pred_check
      _
    $region46: #{simple_llama_forward.5} parent=5 // pred_check_branch
      %240 = sbr.rel (%p237) target = $region48
    $region47: #{simple_llama_forward.5} parent=5 // pred_region
      %s241 = ssub.s32 %s13, 1
      %p242 = scmp.lt.s32.totalorder %s18, 1
      %s243 = scalar_select %p242, %s18, 1
      %s244 = smul.addr %s243, 8
      %s245 = scalar_lea.vmem %s0, %s244
      %p246 = pneg %p39
      %p247 = pneg %p36
      %p248 = pneg %p60
      %p249 = pneg %p57
      %p250 = pneg %p81
      %p251 = pneg %p78
      %p252 = pneg %p102
      %p253 = pneg %p99
      %p254 = pneg %p123
      %p255 = pneg %p120
      %p256 = pneg %p144
      %p257 = pneg %p141
      %p258 = pneg %p165
      %p259 = pneg %p162
      %p260 = pneg %p191
      %p261 = pneg %p188
      %p262 = scmp.lt.s32.totalorder %s18, 1
      %s263 = scalar_select %p262, %s18, 1
      %s264 = smul.addr %s263, 8
      %s265 = scalar_lea.vmem %s7, %s264
      %p266 = scmp.lt.s32.totalorder %s18, 1
      %s267 = scalar_select %p266, %s18, 1
      %s268 = smul.addr %s267, 8
      %s269 = scalar_lea.vmem %s0, %s268
      %p270 = scmp.lt.s32.totalorder %s18, 1
      %s271 = scalar_select %p270, %s18, 1
      %s272 = smul.addr %s271, 8
      %s273 = scalar_lea.vmem %s7, %s272
      %v275 = vld [vmem:[%s269] sm:$0xff]
      %v276 = vpack.c.bf16 %v275, %v275
      %v277 = vld [vmem:[%s1] sm:$0xf]
      %v278 = vld [vmem:[%s1 + $0x4] sm:$0xf]
      %v279 = vld [vmem:[%s1 + $0x8] sm:$0xf]
      %v280 = vld [vmem:[%s1 + $0xc] sm:$0xf]
      %v281 = vld [vmem:[%s2] sm:$0x1]
      %v283 = vlaneseq
      %v284 = vshrl.u32 %v283, 7
      %v285 = vsub.s32 0, %v284
      %v286 = vrot.slane %v281, %v285
      %v292 = vunpack.c.l.b16 %v277
      %v293 = vunpack.c.l.b16 %v278
      %v294 = vunpack.c.l.b16 %v279
      %v295 = vunpack.c.l.b16 %v280
      %v296 = vpack.c.b16 %v293, %v292
      %v297 = vpack.c.b16 %v295, %v294
      %vm300 = vcmask 261120
      %v302 = vsel %vm300, %v276, 0
      %304 = vmatprep.subr.bf16.mxu0 0
      %305 = vmatpush1.bf16.msra.mxu0 %v296
      %306 = vmatprep.subr.bf16.mxu0 0
      %307 = vmatpush1.bf16.msra.mxu0 %v297
      %308 = vmatprep.subr.bf16.mxu0 0
      %309 = vmatpush1.bf16.msra.mxu0 0
      %310 = vmatprep.subr.bf16.mxu0 0
      %311 = vmatpush1.bf16.msra.mxu0 0
      %312 = vmatprep.subr.bf16.mxu0 0
      %313 = vmatpush1.bf16.msra.mxu0 0
      %314 = vmatprep.subr.bf16.mxu0 0
      %315 = vmatpush1.bf16.msra.mxu0 0
      %316 = vmatprep.subr.bf16.mxu0 0
      %317 = vmatpush1.bf16.msra.mxu0 0
      %318 = vmatprep.subr.bf16.mxu0 0
      %319 = vmatpush1.bf16.msra.mxu0 0
      %320 = vmatprep.subr.bf16.mxu0 0
      %321 = vmatpush1.bf16.msra.mxu0 0
      %322 = vmatprep.subr.bf16.mxu0 0
      %323 = vmatpush1.bf16.msra.mxu0 0
      %324 = vmatprep.subr.bf16.mxu0 0
      %325 = vmatpush1.bf16.msra.mxu0 0
      %326 = vmatprep.subr.bf16.mxu0 0
      %327 = vmatpush1.bf16.msra.mxu0 0
      %328 = vmatprep.subr.bf16.mxu0 0
      %329 = vmatpush1.bf16.msra.mxu0 0
      %330 = vmatprep.subr.bf16.mxu0 0
      %331 = vmatpush1.bf16.msra.mxu0 0
      %332 = vmatprep.subr.bf16.mxu0 0
      %333 = vmatpush1.bf16.msra.mxu0 0
      %334 = vmatprep.subr.bf16.mxu0 0
      %335 = vmatpush1.bf16.msra.mxu0 0
      %336 = vmatprep.mubr.bf16.mxu0 0
      %337 = vmatmul.mubr.bf16.gmra.mrb[0].mxu0 %v302
      %v338 = vpop.f32.mrb[0].mxu0
      %v339 = vadd.f32 %v286, %v338
      %v340 = vpop.f32.mrb[0].mxu0
      %v341 = vpop.f32.mrb[0].mxu0
      %v342 = vpop.f32.mrb[0].mxu0
      %343 = vdwg.mxu0
      %v344 = vpack.c.bf16 %v339, %v339
      %346 = vrot.lane.b32.xlu0 %v344, 96
      %v347 = vpop.permute.xlu0 %346
      %vm348 = vcmask 64512
      %v350 = vsel %vm348, %v344, 0
      %v353 = vsel %vm348, %v347, 0
      %355 = vmatprep.subr.bf16.mxu0 0
      %356 = vmatpush1.bf16.xpose.msra.mxu0 %v353
      %357 = vmatprep.subr.bf16.mxu0 0
      %358 = vmatpush1.bf16.xpose.msra.mxu0 0
      %359 = vmatprep.subr.bf16.mxu0 0
      %360 = vmatpush1.bf16.xpose.msra.mxu0 0
      %361 = vmatprep.subr.bf16.mxu0 0
      %362 = vmatpush1.bf16.xpose.msra.mxu0 0
      %363 = vmatprep.subr.bf16.mxu0 0
      %364 = vmatpush1.bf16.xpose.msra.mxu0 0
      %365 = vmatprep.subr.bf16.mxu0 0
      %366 = vmatpush1.bf16.xpose.msra.mxu0 0
      %367 = vmatprep.subr.bf16.mxu0 0
      %368 = vmatpush1.bf16.xpose.msra.mxu0 0
      %369 = vmatprep.subr.bf16.mxu0 0
      %370 = vmatpush1.bf16.xpose.msra.mxu0 0
      %371 = vmatprep.subr.bf16.mxu0 0
      %372 = vmatpush1.bf16.xpose.msra.mxu0 0
      %373 = vmatprep.subr.bf16.mxu0 0
      %374 = vmatpush1.bf16.xpose.msra.mxu0 0
      %375 = vmatprep.subr.bf16.mxu0 0
      %376 = vmatpush1.bf16.xpose.msra.mxu0 0
      %377 = vmatprep.subr.bf16.mxu0 0
      %378 = vmatpush1.bf16.xpose.msra.mxu0 0
      %379 = vmatprep.subr.bf16.mxu0 0
      %380 = vmatpush1.bf16.xpose.msra.mxu0 0
      %381 = vmatprep.subr.bf16.mxu0 0
      %382 = vmatpush1.bf16.xpose.msra.mxu0 0
      %383 = vmatprep.subr.bf16.mxu0 0
      %384 = vmatpush1.bf16.xpose.msra.mxu0 0
      %385 = vmatprep.subr.bf16.mxu0 0
      %386 = vmatpush1.bf16.xpose.msra.mxu0 0
      %387 = vmatprep.mubr.bf16.mxu0 0
      %388 = vmatmul.mubr.bf16.gmra.mrb[0].mxu0 %v350
      %v389 = vpop.f32.mrb[0].mxu0
      %v390 = vadd.f32 0.0, %v389
      %v391 = vpop.f32.mrb[0].mxu0
      %v392 = vpop.f32.mrb[0].mxu0
      %v393 = vpop.f32.mrb[0].mxu0
      %394 = vdwg.mxu0
      %v395 = vmul.f32 %v390, 0.35355338
      %v396 = vsel %vm348, %v395, -inf
      %397 = vmax.xlane.f32.xlu0 %v396
      %v398 = vpop.xlane.xlu0 %397
      %v399 = vsub.f32 %v395, %v398
      %v400 = vmul.f32 %v399, 1.442695
      %v401 = vpow.pop %v400
      %v402 = vsel %vm348, %v401, 0.0
      %403 = vadd.xlane.f32.xlu0 %v402
      %v404 = vpop.xlane.xlu0 %403
      %v405 = vrcp.pop %v404
      %v406 = vmul.f32 %v401, %v405
      %v407 = vpack.c.bf16 %v406, %v406
      %408 = vrot.lane.b32.xlu0 %v344, 64
      %v409 = vpop.permute.xlu0 %408
      %v411 = vsel %vm348, %v407, 0
      %vm413 = vcmask 1043456
      %v415 = vsel %vm413, %v409, 0
      %417 = vmatprep.subr.bf16.mxu0 0
      %418 = vmatpush1.bf16.msra.mxu0 %v415
      %419 = vmatprep.subr.bf16.mxu0 0
      %420 = vmatpush1.bf16.msra.mxu0 0
      %421 = vmatprep.subr.bf16.mxu0 0
      %422 = vmatpush1.bf16.msra.mxu0 0
      %423 = vmatprep.subr.bf16.mxu0 0
      %424 = vmatpush1.bf16.msra.mxu0 0
      %425 = vmatprep.subr.bf16.mxu0 0
      %426 = vmatpush1.bf16.msra.mxu0 0
      %427 = vmatprep.subr.bf16.mxu0 0
      %428 = vmatpush1.bf16.msra.mxu0 0
      %429 = vmatprep.subr.bf16.mxu0 0
      %430 = vmatpush1.bf16.msra.mxu0 0
      %431 = vmatprep.subr.bf16.mxu0 0
      %432 = vmatpush1.bf16.msra.mxu0 0
      %433 = vmatprep.subr.bf16.mxu0 0
      %434 = vmatpush1.bf16.msra.mxu0 0
      %435 = vmatprep.subr.bf16.mxu0 0
      %436 = vmatpush1.bf16.msra.mxu0 0
      %437 = vmatprep.subr.bf16.mxu0 0
      %438 = vmatpush1.bf16.msra.mxu0 0
      %439 = vmatprep.subr.bf16.mxu0 0
      %440 = vmatpush1.bf16.msra.mxu0 0
      %441 = vmatprep.subr.bf16.mxu0 0
      %442 = vmatpush1.bf16.msra.mxu0 0
      %443 = vmatprep.subr.bf16.mxu0 0
      %444 = vmatpush1.bf16.msra.mxu0 0
      %445 = vmatprep.subr.bf16.mxu0 0
      %446 = vmatpush1.bf16.msra.mxu0 0
      %447 = vmatprep.subr.bf16.mxu0 0
      %448 = vmatpush1.bf16.msra.mxu0 0
      %449 = vmatprep.mubr.bf16.mxu0 0
      %450 = vmatmul.mubr.bf16.gmra.mrb[0].mxu0 %v411
      %v451 = vpop.f32.mrb[0].mxu0
      %v452 = vadd.f32 0.0, %v451
      %v453 = vpop.f32.mrb[0].mxu0
      %v454 = vpop.f32.mrb[0].mxu0
      %v455 = vpop.f32.mrb[0].mxu0
      %456 = vdwg.mxu0
      %457 = vst.msk [vmem:[#allocation2] sm:$0xff] %vm348, %v452
      %458 = vrot.lane.b32.xlu0 %v344, 120
      %v459 = vpop.permute.xlu0 %458
      %460 = vrot.lane.b32.xlu0 %v344, 88
      %v461 = vpop.permute.xlu0 %460
      %v463 = vsel %vm348, %v459, 0
      %v466 = vsel %vm348, %v461, 0
      %468 = vmatprep.subr.bf16.mxu0 0
      %469 = vmatpush1.bf16.xpose.msra.mxu0 %v466
      %470 = vmatprep.subr.bf16.mxu0 0
      %471 = vmatpush1.bf16.xpose.msra.mxu0 0
      %472 = vmatprep.subr.bf16.mxu0 0
      %473 = vmatpush1.bf16.xpose.msra.mxu0 0
      %474 = vmatprep.subr.bf16.mxu0 0
      %475 = vmatpush1.bf16.xpose.msra.mxu0 0
      %476 = vmatprep.subr.bf16.mxu0 0
      %477 = vmatpush1.bf16.xpose.msra.mxu0 0
      %478 = vmatprep.subr.bf16.mxu0 0
      %479 = vmatpush1.bf16.xpose.msra.mxu0 0
      %480 = vmatprep.subr.bf16.mxu0 0
      %481 = vmatpush1.bf16.xpose.msra.mxu0 0
      %482 = vmatprep.subr.bf16.mxu0 0
      %483 = vmatpush1.bf16.xpose.msra.mxu0 0
      %484 = vmatprep.subr.bf16.mxu0 0
      %485 = vmatpush1.bf16.xpose.msra.mxu0 0
      %486 = vmatprep.subr.bf16.mxu0 0
      %487 = vmatpush1.bf16.xpose.msra.mxu0 0
      %488 = vmatprep.subr.bf16.mxu0 0
      %489 = vmatpush1.bf16.xpose.msra.mxu0 0
      %490 = vmatprep.subr.bf16.mxu0 0
      %491 = vmatpush1.bf16.xpose.msra.mxu0 0
      %492 = vmatprep.subr.bf16.mxu0 0
      %493 = vmatpush1.bf16.xpose.msra.mxu0 0
      %494 = vmatprep.subr.bf16.mxu0 0
      %495 = vmatpush1.bf16.xpose.msra.mxu0 0
      %496 = vmatprep.subr.bf16.mxu0 0
      %497 = vmatpush1.bf16.xpose.msra.mxu0 0
      %498 = vmatprep.subr.bf16.mxu0 0
      %499 = vmatpush1.bf16.xpose.msra.mxu0 0
      %500 = vmatprep.mubr.bf16.mxu0 0
      %501 = vmatmul.mubr.bf16.gmra.mrb[0].mxu0 %v463
      %v502 = vpop.f32.mrb[0].mxu0
      %v503 = vadd.f32 0.0, %v502
      %v504 = vpop.f32.mrb[0].mxu0
      %v505 = vpop.f32.mrb[0].mxu0
      %v506 = vpop.f32.mrb[0].mxu0
      %507 = vdwg.mxu0
      %v508 = vmul.f32 %v503, 0.35355338
      %v509 = vsel %vm348, %v508, -inf
      %510 = vmax.xlane.f32.xlu0 %v509
      %v511 = vpop.xlane.xlu0 %510
      %v512 = vsub.f32 %v508, %v511
      %v513 = vmul.f32 %v512, 1.442695
      %v514 = vpow.pop %v513
      %v515 = vsel %vm348, %v514, 0.0
      %516 = vadd.xlane.f32.xlu0 %v515
      %v517 = vpop.xlane.xlu0 %516
      %v518 = vrcp.pop %v517
      %v519 = vmul.f32 %v514, %v518
      %v520 = vpack.c.bf16 %v519, %v519
      %521 = vrot.lane.b32.xlu0 %v344, 56
      %v522 = vpop.permute.xlu0 %521
      %v524 = vsel %vm348, %v520, 0
      %v527 = vsel %vm413, %v522, 0
      %529 = vmatprep.subr.bf16.mxu0 0
      %530 = vmatpush1.bf16.msra.mxu0 %v527
      %531 = vmatprep.subr.bf16.mxu0 0
      %532 = vmatpush1.bf16.msra.mxu0 0
      %533 = vmatprep.subr.bf16.mxu0 0
      %534 = vmatpush1.bf16.msra.mxu0 0
      %535 = vmatprep.subr.bf16.mxu0 0
      %536 = vmatpush1.bf16.msra.mxu0 0
      %537 = vmatprep.subr.bf16.mxu0 0
      %538 = vmatpush1.bf16.msra.mxu0 0
      %539 = vmatprep.subr.bf16.mxu0 0
      %540 = vmatpush1.bf16.msra.mxu0 0
      %541 = vmatprep.subr.bf16.mxu0 0
      %542 = vmatpush1.bf16.msra.mxu0 0
      %543 = vmatprep.subr.bf16.mxu0 0
      %544 = vmatpush1.bf16.msra.mxu0 0
      %545 = vmatprep.subr.bf16.mxu0 0
      %546 = vmatpush1.bf16.msra.mxu0 0
      %547 = vmatprep.subr.bf16.mxu0 0
      %548 = vmatpush1.bf16.msra.mxu0 0
      %549 = vmatprep.subr.bf16.mxu0 0
      %550 = vmatpush1.bf16.msra.mxu0 0
      %551 = vmatprep.subr.bf16.mxu0 0
      %552 = vmatpush1.bf16.msra.mxu0 0
      %553 = vmatprep.subr.bf16.mxu0 0
      %554 = vmatpush1.bf16.msra.mxu0 0
      %555 = vmatprep.subr.bf16.mxu0 0
      %556 = vmatpush1.bf16.msra.mxu0 0
      %557 = vmatprep.subr.bf16.mxu0 0
      %558 = vmatpush1.bf16.msra.mxu0 0
      %559 = vmatprep.subr.bf16.mxu0 0
      %560 = vmatpush1.bf16.msra.mxu0 0
      %561 = vmatprep.mubr.bf16.mxu0 0
      %562 = vmatmul.mubr.bf16.gmra.mrb[0].mxu0 %v524
      %v563 = vpop.f32.mrb[0].mxu0
      %v564 = vadd.f32 0.0, %v563
      %v565 = vpop.f32.mrb[0].mxu0
      %v566 = vpop.f32.mrb[0].mxu0
      %v567 = vpop.f32.mrb[0].mxu0
      %568 = vdwg.mxu0
      %570 = vrot.lane.b32.xlu0 %v564, 8
      %v571 = vpop.permute.xlu0 %570
      %vm573 = vcmask 130112
      %574 = vst.msk [vmem:[#allocation2] sm:$0xff] %vm573, %v571
      %575 = vrot.lane.b32.xlu0 %v344, 112
      %v576 = vpop.permute.xlu0 %575
      %577 = vrot.lane.b32.xlu0 %v344, 80
      %v578 = vpop.permute.xlu0 %577
      %v580 = vsel %vm348, %v576, 0
      %v583 = vsel %vm348, %v578, 0
      %585 = vmatprep.subr.bf16.mxu0 0
      %586 = vmatpush1.bf16.xpose.msra.mxu0 %v583
      %587 = vmatprep.subr.bf16.mxu0 0
      %588 = vmatpush1.bf16.xpose.msra.mxu0 0
      %589 = vmatprep.subr.bf16.mxu0 0
      %590 = vmatpush1.bf16.xpose.msra.mxu0 0
      %591 = vmatprep.subr.bf16.mxu0 0
      %592 = vmatpush1.bf16.xpose.msra.mxu0 0
      %593 = vmatprep.subr.bf16.mxu0 0
      %594 = vmatpush1.bf16.xpose.msra.mxu0 0
      %595 = vmatprep.subr.bf16.mxu0 0
      %596 = vmatpush1.bf16.xpose.msra.mxu0 0
      %597 = vmatprep.subr.bf16.mxu0 0
      %598 = vmatpush1.bf16.xpose.msra.mxu0 0
      %599 = vmatprep.subr.bf16.mxu0 0
      %600 = vmatpush1.bf16.xpose.msra.mxu0 0
      %601 = vmatprep.subr.bf16.mxu0 0
      %602 = vmatpush1.bf16.xpose.msra.mxu0 0
      %603 = vmatprep.subr.bf16.mxu0 0
      %604 = vmatpush1.bf16.xpose.msra.mxu0 0
      %605 = vmatprep.subr.bf16.mxu0 0
      %606 = vmatpush1.bf16.xpose.msra.mxu0 0
      %607 = vmatprep.subr.bf16.mxu0 0
      %608 = vmatpush1.bf16.xpose.msra.mxu0 0
      %609 = vmatprep.subr.bf16.mxu0 0
      %610 = vmatpush1.bf16.xpose.msra.mxu0 0
      %611 = vmatprep.subr.bf16.mxu0 0
      %612 = vmatpush1.bf16.xpose.msra.mxu0 0
      %613 = vmatprep.subr.bf16.mxu0 0
      %614 = vmatpush1.bf16.xpose.msra.mxu0 0
      %615 = vmatprep.subr.bf16.mxu0 0
      %616 = vmatpush1.bf16.xpose.msra.mxu0 0
      %617 = vmatprep.mubr.bf16.mxu0 0
      %618 = vmatmul.mubr.bf16.gmra.mrb[0].mxu0 %v580
      %v619 = vpop.f32.mrb[0].mxu0
      %v620 = vadd.f32 0.0, %v619
      %v621 = vpop.f32.mrb[0].mxu0
      %v622 = vpop.f32.mrb[0].mxu0
      %v623 = vpop.f32.mrb[0].mxu0
      %624 = vdwg.mxu0
      %v625 = vmul.f32 %v620, 0.35355338
      %v626 = vsel %vm348, %v625, -inf
      %627 = vmax.xlane.f32.xlu0 %v626
      %v628 = vpop.xlane.xlu0 %627
      %v629 = vsub.f32 %v625, %v628
      %v630 = vmul.f32 %v629, 1.442695
      %v631 = vpow.pop %v630
      %v632 = vsel %vm348, %v631, 0.0
      %633 = vadd.xlane.f32.xlu0 %v632
      %v634 = vpop.xlane.xlu0 %633
      %v635 = vrcp.pop %v634
      %v636 = vmul.f32 %v631, %v635
      %v637 = vpack.c.bf16 %v636, %v636
      %638 = vrot.lane.b32.xlu0 %v344, 48
      %v639 = vpop.permute.xlu0 %638
      %v641 = vsel %vm348, %v637, 0
      %v644 = vsel %vm413, %v639, 0
      %646 = vmatprep.subr.bf16.mxu0 0
      %647 = vmatpush1.bf16.msra.mxu0 %v644
      %648 = vmatprep.subr.bf16.mxu0 0
      %649 = vmatpush1.bf16.msra.mxu0 0
      %650 = vmatprep.subr.bf16.mxu0 0
      %651 = vmatpush1.bf16.msra.mxu0 0
      %652 = vmatprep.subr.bf16.mxu0 0
      %653 = vmatpush1.bf16.msra.mxu0 0
      %654 = vmatprep.subr.bf16.mxu0 0
      %655 = vmatpush1.bf16.msra.mxu0 0
      %656 = vmatprep.subr.bf16.mxu0 0
      %657 = vmatpush1.bf16.msra.mxu0 0
      %658 = vmatprep.subr.bf16.mxu0 0
      %659 = vmatpush1.bf16.msra.mxu0 0
      %660 = vmatprep.subr.bf16.mxu0 0
      %661 = vmatpush1.bf16.msra.mxu0 0
      %662 = vmatprep.subr.bf16.mxu0 0
      %663 = vmatpush1.bf16.msra.mxu0 0
      %664 = vmatprep.subr.bf16.mxu0 0
      %665 = vmatpush1.bf16.msra.mxu0 0
      %666 = vmatprep.subr.bf16.mxu0 0
      %667 = vmatpush1.bf16.msra.mxu0 0
      %668 = vmatprep.subr.bf16.mxu0 0
      %669 = vmatpush1.bf16.msra.mxu0 0
      %670 = vmatprep.subr.bf16.mxu0 0
      %671 = vmatpush1.bf16.msra.mxu0 0
      %672 = vmatprep.subr.bf16.mxu0 0
      %673 = vmatpush1.bf16.msra.mxu0 0
      %674 = vmatprep.subr.bf16.mxu0 0
      %675 = vmatpush1.bf16.msra.mxu0 0
      %676 = vmatprep.subr.bf16.mxu0 0
      %677 = vmatpush1.bf16.msra.mxu0 0
      %678 = vmatprep.mubr.bf16.mxu0 0
      %679 = vmatmul.mubr.bf16.gmra.mrb[0].mxu0 %v641
      %v680 = vpop.f32.mrb[0].mxu0
      %v681 = vadd.f32 0.0, %v680
      %v682 = vpop.f32.mrb[0].mxu0
      %v683 = vpop.f32.mrb[0].mxu0
      %v684 = vpop.f32.mrb[0].mxu0
      %685 = vdwg.mxu0
      %687 = vrot.lane.b32.xlu0 %v681, 16
      %v688 = vpop.permute.xlu0 %687
      %vm690 = vcmask 195712
      %691 = vst.msk [vmem:[#allocation2] sm:$0xff] %vm690, %v688
      %692 = vrot.lane.b32.xlu0 %v344, 104
      %v693 = vpop.permute.xlu0 %692
      %694 = vrot.lane.b32.xlu0 %v344, 72
      %v695 = vpop.permute.xlu0 %694
      %v697 = vsel %vm348, %v693, 0
      %v700 = vsel %vm348, %v695, 0
      %702 = vmatprep.subr.bf16.mxu0 0
      %703 = vmatpush1.bf16.xpose.msra.mxu0 %v700
      %704 = vmatprep.subr.bf16.mxu0 0
      %705 = vmatpush1.bf16.xpose.msra.mxu0 0
      %706 = vmatprep.subr.bf16.mxu0 0
      %707 = vmatpush1.bf16.xpose.msra.mxu0 0
      %708 = vmatprep.subr.bf16.mxu0 0
      %709 = vmatpush1.bf16.xpose.msra.mxu0 0
      %710 = vmatprep.subr.bf16.mxu0 0
      %711 = vmatpush1.bf16.xpose.msra.mxu0 0
      %712 = vmatprep.subr.bf16.mxu0 0
      %713 = vmatpush1.bf16.xpose.msra.mxu0 0
      %714 = vmatprep.subr.bf16.mxu0 0
      %715 = vmatpush1.bf16.xpose.msra.mxu0 0
      %716 = vmatprep.subr.bf16.mxu0 0
      %717 = vmatpush1.bf16.xpose.msra.mxu0 0
      %718 = vmatprep.subr.bf16.mxu0 0
      %719 = vmatpush1.bf16.xpose.msra.mxu0 0
      %720 = vmatprep.subr.bf16.mxu0 0
      %721 = vmatpush1.bf16.xpose.msra.mxu0 0
      %722 = vmatprep.subr.bf16.mxu0 0
      %723 = vmatpush1.bf16.xpose.msra.mxu0 0
      %724 = vmatprep.subr.bf16.mxu0 0
      %725 = vmatpush1.bf16.xpose.msra.mxu0 0
      %726 = vmatprep.subr.bf16.mxu0 0
      %727 = vmatpush1.bf16.xpose.msra.mxu0 0
      %728 = vmatprep.subr.bf16.mxu0 0
      %729 = vmatpush1.bf16.xpose.msra.mxu0 0
      %730 = vmatprep.subr.bf16.mxu0 0
      %731 = vmatpush1.bf16.xpose.msra.mxu0 0
      %732 = vmatprep.subr.bf16.mxu0 0
      %733 = vmatpush1.bf16.xpose.msra.mxu0 0
      %734 = vmatprep.mubr.bf16.mxu0 0
      %735 = vmatmul.mubr.bf16.gmra.mrb[0].mxu0 %v697
      %v736 = vpop.f32.mrb[0].mxu0
      %v737 = vadd.f32 0.0, %v736
      %v738 = vpop.f32.mrb[0].mxu0
      %v739 = vpop.f32.mrb[0].mxu0
      %v740 = vpop.f32.mrb[0].mxu0
      %741 = vdwg.mxu0
      %v742 = vmul.f32 %v737, 0.35355338
      %v743 = vsel %vm348, %v742, -inf
      %744 = vmax.xlane.f32.xlu0 %v743
      %v745 = vpop.xlane.xlu0 %744
      %v746 = vsub.f32 %v742, %v745
      %v747 = vmul.f32 %v746, 1.442695
      %v748 = vpow.pop %v747
      %v749 = vsel %vm348, %v748, 0.0
      %750 = vadd.xlane.f32.xlu0 %v749
      %v751 = vpop.xlane.xlu0 %750
      %v752 = vrcp.pop %v751
      %v753 = vmul.f32 %v748, %v752
      %v754 = vpack.c.bf16 %v753, %v753
      %755 = vrot.lane.b32.xlu0 %v344, 40
      %v756 = vpop.permute.xlu0 %755
      %v758 = vsel %vm348, %v754, 0
      %v761 = vsel %vm413, %v756, 0
      %763 = vmatprep.subr.bf16.mxu0 0
      %764 = vmatpush1.bf16.msra.mxu0 %v761
      %765 = vmatprep.subr.bf16.mxu0 0
      %766 = vmatpush1.bf16.msra.mxu0 0
      %767 = vmatprep.subr.bf16.mxu0 0
      %768 = vmatpush1.bf16.msra.mxu0 0
      %769 = vmatprep.subr.bf16.mxu0 0
      %770 = vmatpush1.bf16.msra.mxu0 0
      %771 = vmatprep.subr.bf16.mxu0 0
      %772 = vmatpush1.bf16.msra.mxu0 0
      %773 = vmatprep.subr.bf16.mxu0 0
      %774 = vmatpush1.bf16.msra.mxu0 0
      %775 = vmatprep.subr.bf16.mxu0 0
      %776 = vmatpush1.bf16.msra.mxu0 0
      %777 = vmatprep.subr.bf16.mxu0 0
      %778 = vmatpush1.bf16.msra.mxu0 0
      %779 = vmatprep.subr.bf16.mxu0 0
      %780 = vmatpush1.bf16.msra.mxu0 0
      %781 = vmatprep.subr.bf16.mxu0 0
      %782 = vmatpush1.bf16.msra.mxu0 0
      %783 = vmatprep.subr.bf16.mxu0 0
      %784 = vmatpush1.bf16.msra.mxu0 0
      %785 = vmatprep.subr.bf16.mxu0 0
      %786 = vmatpush1.bf16.msra.mxu0 0
      %787 = vmatprep.subr.bf16.mxu0 0
      %788 = vmatpush1.bf16.msra.mxu0 0
      %789 = vmatprep.subr.bf16.mxu0 0
      %790 = vmatpush1.bf16.msra.mxu0 0
      %791 = vmatprep.subr.bf16.mxu0 0
      %792 = vmatpush1.bf16.msra.mxu0 0
      %793 = vmatprep.subr.bf16.mxu0 0
      %794 = vmatpush1.bf16.msra.mxu0 0
      %795 = vmatprep.mubr.bf16.mxu0 0
      %796 = vmatmul.mubr.bf16.gmra.mrb[0].mxu0 %v758
      %v797 = vpop.f32.mrb[0].mxu0
      %v798 = vadd.f32 0.0, %v797
      %v799 = vpop.f32.mrb[0].mxu0
      %v800 = vpop.f32.mrb[0].mxu0
      %v801 = vpop.f32.mrb[0].mxu0
      %802 = vdwg.mxu0
      %804 = vrot.lane.b32.xlu0 %v798, 24
      %v805 = vpop.permute.xlu0 %804
      %vm807 = vcmask 261312
      %808 = vst.msk [vmem:[#allocation2] sm:$0xff] %vm807, %v805
      %v809 = vld [vmem:[#allocation2] sm:$0xff]
      %v810 = vpack.c.bf16 %v809, %v809
      %v811 = vld [vmem:[%s3] sm:$0xf]
      %v812 = vld [vmem:[%s3 + $0x4] sm:$0xf]
      %v813 = vld [vmem:[%s3 + $0x8] sm:$0xf]
      %v814 = vld [vmem:[%s3 + $0xc] sm:$0xf]
      %v815 = vld [vmem:[%s4] sm:$0x1]
      %v817 = vlaneseq
      %v818 = vshrl.u32 %v817, 7
      %v819 = vsub.s32 0, %v818
      %v820 = vrot.slane %v815, %v819
      %v826 = vunpack.c.l.b16 %v811
      %v827 = vunpack.c.l.b16 %v812
      %v828 = vunpack.c.l.b16 %v813
      %v829 = vunpack.c.l.b16 %v814
      %v830 = vpack.c.b16 %v827, %v826
      %v831 = vpack.c.b16 %v829, %v828
      %v835 = vsel %vm300, %v810, 0
      %837 = vmatprep.subr.bf16.mxu0 0
      %838 = vmatpush1.bf16.msra.mxu0 %v830
      %839 = vmatprep.subr.bf16.mxu0 0
      %840 = vmatpush1.bf16.msra.mxu0 %v831
      %841 = vmatprep.subr.bf16.mxu0 0
      %842 = vmatpush1.bf16.msra.mxu0 0
      %843 = vmatprep.subr.bf16.mxu0 0
      %844 = vmatpush1.bf16.msra.mxu0 0
      %845 = vmatprep.subr.bf16.mxu0 0
      %846 = vmatpush1.bf16.msra.mxu0 0
      %847 = vmatprep.subr.bf16.mxu0 0
      %848 = vmatpush1.bf16.msra.mxu0 0
      %849 = vmatprep.subr.bf16.mxu0 0
      %850 = vmatpush1.bf16.msra.mxu0 0
      %851 = vmatprep.subr.bf16.mxu0 0
      %852 = vmatpush1.bf16.msra.mxu0 0
      %853 = vmatprep.subr.bf16.mxu0 0
      %854 = vmatpush1.bf16.msra.mxu0 0
      %855 = vmatprep.subr.bf16.mxu0 0
      %856 = vmatpush1.bf16.msra.mxu0 0
      %857 = vmatprep.subr.bf16.mxu0 0
      %858 = vmatpush1.bf16.msra.mxu0 0
      %859 = vmatprep.subr.bf16.mxu0 0
      %860 = vmatpush1.bf16.msra.mxu0 0
      %861 = vmatprep.subr.bf16.mxu0 0
      %862 = vmatpush1.bf16.msra.mxu0 0
      %863 = vmatprep.subr.bf16.mxu0 0
      %864 = vmatpush1.bf16.msra.mxu0 0
      %865 = vmatprep.subr.bf16.mxu0 0
      %866 = vmatpush1.bf16.msra.mxu0 0
      %867 = vmatprep.subr.bf16.mxu0 0
      %868 = vmatpush1.bf16.msra.mxu0 0
      %869 = vmatprep.mubr.bf16.mxu0 0
      %870 = vmatmul.mubr.bf16.gmra.mrb[0].mxu0 %v835
      %v871 = vpop.f32.mrb[0].mxu0
      %v872 = vadd.f32 %v820, %v871
      %v873 = vpop.f32.mrb[0].mxu0
      %v874 = vpop.f32.mrb[0].mxu0
      %v875 = vpop.f32.mrb[0].mxu0
      %876 = vdwg.mxu0
      %v877 = vadd.f32 %v275, %v872
      %v878 = vsel %vm300, %v877, 0.0
      %879 = vadd.xlane.f32.xlu0 %v878
      %v880 = vpop.xlane.xlu0 %879
      %v881 = vrcp.pop 32.0
      %v882 = vmul.f32 %v880, %v881
      %v883 = vsub.f32 %v877, %v882
      %v884 = vmul.f32 %v883, %v883
      %v885 = vsel %vm300, %v884, 0.0
      %886 = vadd.xlane.f32.xlu0 %v885
      %v887 = vpop.xlane.xlu0 %886
      %v888 = vmul.f32 %v887, %v881
      %v889 = vadd.f32 %v888, 1e-05
      %v890 = vrsqrt.pop %v889
      %v891 = vmul.f32 %v883, %v890
      %v892 = vld [vmem:[%s5] sm:$0x1]
      %v894 = vlaneseq
      %v895 = vshrl.u32 %v894, 7
      %v896 = vsub.s32 0, %v895
      %v897 = vrot.slane %v892, %v896
      %v899 = vmul.f32 %v891, %v897
      %v900 = vld [vmem:[%s6] sm:$0x1]
      %v902 = vlaneseq
      %v903 = vshrl.u32 %v902, 7
      %v904 = vsub.s32 0, %v903
      %v905 = vrot.slane %v900, %v904
      %v907 = vadd.f32 %v899, %v905
      %908 = vst.msk [vmem:[%s273] sm:$0xff] %vm300, %v907
      %p909 = scmp.lt.s32.totalorder %s18, 1
      %s910 = scalar_select %p909, %s18, 1
      %s911 = smul.addr %s910, 8
      %s912 = scalar_lea.vmem %s7, %s911
      // Predicated region
      $region49: #{simple_llama_forward.5} parent=47 // pred_check
        %p913 = pneg %p188
      $region50: #{simple_llama_forward.5} parent=47 // pred_check_branch
        %915 = sbr.rel (%p913) target = $region52
      $region51: #{simple_llama_forward.5} parent=47 // pred_region
        _
      $region52: #{simple_llama_forward.5} parent=47 // pred_fallthru
        _
    $region48: #{simple_llama_forward.5} parent=5 // pred_fallthru
      _
    %p916 = scmp.le.s32.totalorder 2, %s13
    // Predicated region
    $region53: #{simple_llama_forward.5} parent=5 // pred_check
      %p917 = pneg %p916
    $region54: #{simple_llama_forward.5} parent=5 // pred_check_branch
      %919 = sbr.rel (%p917) target = $region56
    $region55: #{simple_llama_forward.5} parent=5 // pred_region
      %s920 = ssub.s32 %s13, 2
      // Predicated region
      $region57: #{simple_llama_forward.5} parent=55 // pred_check
        %p921 = pneg %p194
      $region58: #{simple_llama_forward.5} parent=55 // pred_check_branch
        %923 = sbr.rel (%p921) target = $region60
      $region59: #{simple_llama_forward.5} parent=55 // pred_region
        %p924 = scmp.lt.s32.totalorder %s19, 1
        %s925 = scalar_select %p924, %s19, 1
        %s926 = smul.addr %s925, 8
        %s927 = scalar_lea.vmem %s7, %s926
      $region60: #{simple_llama_forward.5} parent=55 // pred_fallthru
        _
    $region56: #{simple_llama_forward.5} parent=5 // pred_fallthru
      _
  $region6: #{simple_llama_forward.5} parent=0 // loop_footer
    %s17 = sadd.s32 1, %s13
  $region7: #{simple_llama_forward.5} parent=0 // loop_footer_branch
    %12 = sbr.rel target = $region3
  $region8: #{simple_llama_forward.5} parent=0 // loop_exit
    _

// kernel: simple_llama_forward.6
$region0: #{simple_llama_forward.6}
  #allocation0 [shape = 'u32[]', space=smem, size = 0x4, offset = 0x4, fixed_abs, tag = 'smem constant byte address 0x4 - core index']
  #allocation1 [shape = 'u32[144,128]{1,0:T(1,128)}', space=vmem, size = 0x12000, scoped, tag = 'internal scratch']
  #allocation2 [shape = 'f32[16,32]{1,0:T(8,128)}', space=vmem, size = 0x2000, scoped, tag = 'scratch operand']
  %s0 = inlined_call_operand.vmem [shape: f32[16,32], index: 0, kind: input, shape index: {}]
  %s1 = inlined_call_operand.vmem [shape: bf16[32,64], index: 1, kind: input, shape index: {}]
  %s2 = inlined_call_operand.vmem [shape: f32[1,64], index: 2, kind: input, shape index: {}]
  %s3 = inlined_call_operand.vmem [shape: bf16[64,32], index: 3, kind: input, shape index: {}]
  %s4 = inlined_call_operand.vmem [shape: f32[1,32], index: 4, kind: input, shape index: {}]
  %s5 = inlined_call_operand.vmem [shape: f32[1,32], index: 5, kind: input, shape index: {}]
  %s6 = inlined_call_operand.vmem [shape: f32[1,32], index: 6, kind: input, shape index: {}]
  %s7 = inlined_call_operand.vmem [shape: f32[16,32], index: 7, kind: output, shape index: {}]
  %s8 = sld [smem:[#allocation0]]
  $region46: #{simple_llama_forward.6} parent=0
    _
  %s10 = ssub.s32 1, %s8
  %s11 = scalar_select 0, %s10, %s8
  // Predicated region
  $region2: #{simple_llama_forward.6} parent=0 // pred_check
    _
  $region3: #{simple_llama_forward.6} parent=0 // pred_check_branch
    %13 = sbr.rel (0) target = $region5
  $region4: #{simple_llama_forward.6} parent=0 // pred_region
    _
  $region5: #{simple_llama_forward.6} parent=0 // pred_fallthru
    _
  // Predicated region
  $region6: #{simple_llama_forward.6} parent=0 // pred_check
    _
  $region7: #{simple_llama_forward.6} parent=0 // pred_check_branch
    %15 = sbr.rel (0) target = $region9
  $region8: #{simple_llama_forward.6} parent=0 // pred_region
    _
  $region9: #{simple_llama_forward.6} parent=0 // pred_fallthru
    _
  // Predicated region
  $region10: #{simple_llama_forward.6} parent=0 // pred_check
    _
  $region11: #{simple_llama_forward.6} parent=0 // pred_check_branch
    %17 = sbr.rel (0) target = $region13
  $region12: #{simple_llama_forward.6} parent=0 // pred_region
    _
  $region13: #{simple_llama_forward.6} parent=0 // pred_fallthru
    _
  // Predicated region
  $region14: #{simple_llama_forward.6} parent=0 // pred_check
    _
  $region15: #{simple_llama_forward.6} parent=0 // pred_check_branch
    %19 = sbr.rel (0) target = $region17
  $region16: #{simple_llama_forward.6} parent=0 // pred_region
    _
  $region17: #{simple_llama_forward.6} parent=0 // pred_fallthru
    _
  // Predicated region
  $region18: #{simple_llama_forward.6} parent=0 // pred_check
    _
  $region19: #{simple_llama_forward.6} parent=0 // pred_check_branch
    %21 = sbr.rel (0) target = $region21
  $region20: #{simple_llama_forward.6} parent=0 // pred_region
    _
  $region21: #{simple_llama_forward.6} parent=0 // pred_fallthru
    _
  // Predicated region
  $region22: #{simple_llama_forward.6} parent=0 // pred_check
    _
  $region23: #{simple_llama_forward.6} parent=0 // pred_check_branch
    %23 = sbr.rel (0) target = $region25
  $region24: #{simple_llama_forward.6} parent=0 // pred_region
    _
  $region25: #{simple_llama_forward.6} parent=0 // pred_fallthru
    _
  // Predicated region
  $region26: #{simple_llama_forward.6} parent=0 // pred_check
    _
  $region27: #{simple_llama_forward.6} parent=0 // pred_check_branch
    %25 = sbr.rel (0) target = $region29
  $region28: #{simple_llama_forward.6} parent=0 // pred_region
    _
  $region29: #{simple_llama_forward.6} parent=0 // pred_fallthru
    _
  %p27 = scmp.eq.s32.totalorder 0, 0
  // Predicated region
  $region30: #{simple_llama_forward.6} parent=0 // pred_check
    %p28 = pneg %p27
  $region31: #{simple_llama_forward.6} parent=0 // pred_check_branch
    %30 = sbr.rel (%p28) target = $region33
  $region32: #{simple_llama_forward.6} parent=0 // pred_region
    %vm31 = vcmask 261120
    %32 = vst.msk [vmem:[#allocation2] sm:$0xff] %vm31, 0.0
    %33 = vst.msk [vmem:[#allocation2 + $0x8] sm:$0xff] %vm31, 0.0
  $region33: #{simple_llama_forward.6} parent=0 // pred_fallthru
    _
  %v34 = vld [vmem:[%s0] sm:$0xff]
  %v35 = vld [vmem:[%s0 + $0x8] sm:$0xff]
  %v36 = vpack.c.bf16 %v35, %v34
  %v37 = vld [vmem:[%s1] sm:$0xf]
  %v38 = vld [vmem:[%s1 + $0x4] sm:$0xf]
  %v39 = vld [vmem:[%s1 + $0x8] sm:$0xf]
  %v40 = vld [vmem:[%s1 + $0xc] sm:$0xf]
  %v41 = vld [vmem:[%s2] sm:$0x1]
  %v43 = vlaneseq
  %v44 = vshrl.u32 %v43, 7
  %v45 = vsub.s32 0, %v44
  %v46 = vrot.slane %v41, %v45
  %v52 = vunpack.c.l.b16 %v37
  %v53 = vunpack.c.l.b16 %v38
  %v54 = vunpack.c.l.b16 %v39
  %v55 = vunpack.c.l.b16 %v40
  %v56 = vpack.c.b16 %v53, %v52
  %v57 = vpack.c.b16 %v55, %v54
  %vm60 = vcmask 261120
  %v62 = vsel %vm60, %v36, 0
  %64 = vmatprep.subr.bf16.mxu0 0
  %65 = vmatpush1.bf16.msra.mxu0 %v56
  %66 = vmatprep.subr.bf16.mxu0 0
  %67 = vmatpush1.bf16.msra.mxu0 %v57
  %68 = vmatprep.subr.bf16.mxu0 0
  %69 = vmatpush1.bf16.msra.mxu0 0
  %70 = vmatprep.subr.bf16.mxu0 0
  %71 = vmatpush1.bf16.msra.mxu0 0
  %72 = vmatprep.subr.bf16.mxu0 0
  %73 = vmatpush1.bf16.msra.mxu0 0
  %74 = vmatprep.subr.bf16.mxu0 0
  %75 = vmatpush1.bf16.msra.mxu0 0
  %76 = vmatprep.subr.bf16.mxu0 0
  %77 = vmatpush1.bf16.msra.mxu0 0
  %78 = vmatprep.subr.bf16.mxu0 0
  %79 = vmatpush1.bf16.msra.mxu0 0
  %80 = vmatprep.subr.bf16.mxu0 0
  %81 = vmatpush1.bf16.msra.mxu0 0
  %82 = vmatprep.subr.bf16.mxu0 0
  %83 = vmatpush1.bf16.msra.mxu0 0
  %84 = vmatprep.subr.bf16.mxu0 0
  %85 = vmatpush1.bf16.msra.mxu0 0
  %86 = vmatprep.subr.bf16.mxu0 0
  %87 = vmatpush1.bf16.msra.mxu0 0
  %88 = vmatprep.subr.bf16.mxu0 0
  %89 = vmatpush1.bf16.msra.mxu0 0
  %90 = vmatprep.subr.bf16.mxu0 0
  %91 = vmatpush1.bf16.msra.mxu0 0
  %92 = vmatprep.subr.bf16.mxu0 0
  %93 = vmatpush1.bf16.msra.mxu0 0
  %94 = vmatprep.subr.bf16.mxu0 0
  %95 = vmatpush1.bf16.msra.mxu0 0
  %96 = vmatprep.mubr.bf16.mxu0 0
  %97 = vmatmul.mubr.bf16.gmra.mrb[0].mxu0 %v62
  %v98 = vpop.f32.mrb[0].mxu0
  %v99 = vadd.f32 %v46, %v98
  %v100 = vpop.f32.mrb[0].mxu0
  %v101 = vpop.f32.mrb[0].mxu0
  %v102 = vadd.f32 %v46, %v101
  %v103 = vpop.f32.mrb[0].mxu0
  %104 = vdwg.mxu0
  %v105 = vmax.f32 %v99, 0.0
  %v106 = vmax.f32 %v102, 0.0
  %v107 = vld [vmem:[#allocation2] sm:$0xff]
  %v108 = vld [vmem:[#allocation2 + $0x8] sm:$0xff]
  %v109 = vpack.c.bf16 %v106, %v105
  %v110 = vld [vmem:[%s3] sm:$0xf]
  %v111 = vld [vmem:[%s3 + $0x4] sm:$0xf]
  %v112 = vld [vmem:[%s3 + $0x8] sm:$0xf]
  %v113 = vld [vmem:[%s3 + $0xc] sm:$0xf]
  %v114 = vld [vmem:[%s3 + $0x10] sm:$0xf]
  %v115 = vld [vmem:[%s3 + $0x14] sm:$0xf]
  %v116 = vld [vmem:[%s3 + $0x18] sm:$0xf]
  %v117 = vld [vmem:[%s3 + $0x1c] sm:$0xf]
  %v126 = vunpack.c.l.b16 %v110
  %v127 = vunpack.c.l.b16 %v111
  %v128 = vunpack.c.l.b16 %v112
  %v129 = vunpack.c.l.b16 %v113
  %v130 = vunpack.c.l.b16 %v114
  %v131 = vunpack.c.l.b16 %v115
  %v132 = vunpack.c.l.b16 %v116
  %v133 = vunpack.c.l.b16 %v117
  %v134 = vpack.c.b16 %v127, %v126
  %v135 = vpack.c.b16 %v129, %v128
  %v136 = vpack.c.b16 %v131, %v130
  %v137 = vpack.c.b16 %v133, %v132
  %vm142 = vcmask 523264
  %v144 = vsel %vm142, %v109, 0
  %146 = vmatprep.subr.bf16.mxu0 0
  %147 = vmatpush1.bf16.msra.mxu0 %v134
  %148 = vmatprep.subr.bf16.mxu0 0
  %149 = vmatpush1.bf16.msra.mxu0 %v135
  %150 = vmatprep.subr.bf16.mxu0 0
  %151 = vmatpush1.bf16.msra.mxu0 %v136
  %152 = vmatprep.subr.bf16.mxu0 0
  %153 = vmatpush1.bf16.msra.mxu0 %v137
  %154 = vmatprep.subr.bf16.mxu0 0
  %155 = vmatpush1.bf16.msra.mxu0 0
  %156 = vmatprep.subr.bf16.mxu0 0
  %157 = vmatpush1.bf16.msra.mxu0 0
  %158 = vmatprep.subr.bf16.mxu0 0
  %159 = vmatpush1.bf16.msra.mxu0 0
  %160 = vmatprep.subr.bf16.mxu0 0
  %161 = vmatpush1.bf16.msra.mxu0 0
  %162 = vmatprep.subr.bf16.mxu0 0
  %163 = vmatpush1.bf16.msra.mxu0 0
  %164 = vmatprep.subr.bf16.mxu0 0
  %165 = vmatpush1.bf16.msra.mxu0 0
  %166 = vmatprep.subr.bf16.mxu0 0
  %167 = vmatpush1.bf16.msra.mxu0 0
  %168 = vmatprep.subr.bf16.mxu0 0
  %169 = vmatpush1.bf16.msra.mxu0 0
  %170 = vmatprep.subr.bf16.mxu0 0
  %171 = vmatpush1.bf16.msra.mxu0 0
  %172 = vmatprep.subr.bf16.mxu0 0
  %173 = vmatpush1.bf16.msra.mxu0 0
  %174 = vmatprep.subr.bf16.mxu0 0
  %175 = vmatpush1.bf16.msra.mxu0 0
  %176 = vmatprep.subr.bf16.mxu0 0
  %177 = vmatpush1.bf16.msra.mxu0 0
  %178 = vmatprep.mubr.bf16.mxu0 0
  %179 = vmatmul.mubr.bf16.gmra.mrb[0].mxu0 %v144
  %v180 = vpop.f32.mrb[0].mxu0
  %v181 = vadd.f32 0.0, %v180
  %v182 = vpop.f32.mrb[0].mxu0
  %v183 = vpop.f32.mrb[0].mxu0
  %v184 = vadd.f32 0.0, %v183
  %v185 = vpop.f32.mrb[0].mxu0
  %186 = vdwg.mxu0
  %v187 = vadd.f32 %v107, %v181
  %v188 = vadd.f32 %v108, %v184
  %189 = vst.msk [vmem:[#allocation2] sm:$0xff] %vm60, %v187
  %190 = vst.msk [vmem:[#allocation2 + $0x8] sm:$0xff] %vm60, %v188
  // Predicated region
  $region34: #{simple_llama_forward.6} parent=0 // pred_check
    %p191 = pneg %p27
  $region35: #{simple_llama_forward.6} parent=0 // pred_check_branch
    %193 = sbr.rel (%p191) target = $region37
  $region36: #{simple_llama_forward.6} parent=0 // pred_region
    %v194 = vld [vmem:[%s0] sm:$0xff]
    %v195 = vld [vmem:[%s0 + $0x8] sm:$0xff]
    %v196 = vld [vmem:[#allocation2] sm:$0xff]
    %v197 = vld [vmem:[#allocation2 + $0x8] sm:$0xff]
    %v198 = vadd.f32 %v194, %v196
    %v199 = vadd.f32 %v195, %v197
    %v200 = vld [vmem:[%s4] sm:$0x1]
    %v202 = vlaneseq
    %v203 = vshrl.u32 %v202, 7
    %v204 = vsub.s32 0, %v203
    %v205 = vrot.slane %v200, %v204
    %v207 = vadd.f32 %v198, %v205
    %v208 = vadd.f32 %v199, %v205
    %v209 = vsel %vm60, %v207, 0.0
    %210 = vadd.xlane.f32.xlu0 %v209
    %v211 = vpop.xlane.xlu0 %210
    %v212 = vsel %vm60, %v208, 0.0
    %213 = vadd.xlane.f32.xlu0 %v212
    %v214 = vpop.xlane.xlu0 %213
    %v215 = vrcp.pop 32.0
    %v216 = vmul.f32 %v211, %v215
    %v217 = vmul.f32 %v214, %v215
    %v218 = vsub.f32 %v207, %v216
    %v219 = vsub.f32 %v208, %v217
    %v220 = vmul.f32 %v218, %v218
    %v221 = vmul.f32 %v219, %v219
    %v222 = vsel %vm60, %v220, 0.0
    %223 = vadd.xlane.f32.xlu0 %v222
    %v224 = vpop.xlane.xlu0 %223
    %v225 = vsel %vm60, %v221, 0.0
    %226 = vadd.xlane.f32.xlu0 %v225
    %v227 = vpop.xlane.xlu0 %226
    %v228 = vmul.f32 %v224, %v215
    %v229 = vmul.f32 %v227, %v215
    %v230 = vadd.f32 %v228, 1e-05
    %v231 = vadd.f32 %v229, 1e-05
    %v232 = vrsqrt.pop %v230
    %v233 = vrsqrt.pop %v231
    %v234 = vmul.f32 %v218, %v232
    %v235 = vmul.f32 %v219, %v233
    %v236 = vld [vmem:[%s5] sm:$0x1]
    %v238 = vlaneseq
    %v239 = vshrl.u32 %v238, 7
    %v240 = vsub.s32 0, %v239
    %v241 = vrot.slane %v236, %v240
    %v243 = vmul.f32 %v234, %v241
    %v244 = vmul.f32 %v235, %v241
    %v245 = vld [vmem:[%s6] sm:$0x1]
    %v247 = vlaneseq
    %v248 = vshrl.u32 %v247, 7
    %v249 = vsub.s32 0, %v248
    %v250 = vrot.slane %v245, %v249
    %v252 = vadd.f32 %v243, %v250
    %v253 = vadd.f32 %v244, %v250
    %254 = vst.msk [vmem:[%s7] sm:$0xff] %vm60, %v252
    %255 = vst.msk [vmem:[%s7 + $0x8] sm:$0xff] %vm60, %v253
  $region37: #{simple_llama_forward.6} parent=0 // pred_fallthru
    _
  // Predicated region
  $region38: #{simple_llama_forward.6} parent=0 // pred_check
    _
  $region39: #{simple_llama_forward.6} parent=0 // pred_check_branch
    %257 = sbr.rel (0) target = $region41
  $region40: #{simple_llama_forward.6} parent=0 // pred_region
    _
  $region41: #{simple_llama_forward.6} parent=0 // pred_fallthru
    _
  // Predicated region
  $region42: #{simple_llama_forward.6} parent=0 // pred_check
    _
  $region43: #{simple_llama_forward.6} parent=0 // pred_check_branch
    %259 = sbr.rel (0) target = $region45
  $region44: #{simple_llama_forward.6} parent=0 // pred_region
    _
  $region45: #{simple_llama_forward.6} parent=0 // pred_fallthru
    _

</llo_original>
